<compile_context>
chip_gen: v5e
topology: v5e:2x2
jax: 0.10.0
libtpu: 0.0.40
codegen_flags: <defaults>
</compile_context>

<pallas_src>
import numpy as np
import jax
import jax.numpy as jnp
from jax.experimental import pallas as pl
from jax.experimental.pallas import tpu as pltpu


def _lstm_kernel(x_ref, wih0_ref, whh0_ref, b0_ref,
                 wih1_ref, whh1_ref, b1_ref,
                 fcw_ref, fcb_ref, out_ref):
    # x_ref: (T, TB, D) time-major batch tile.  Weights are pre-transposed so
    # contraction is over lanes: wih (Din, 4H), whh (H, 4H), biases (1, 4H).
    T = x_ref.shape[0]
    TB = x_ref.shape[1]
    H = whh0_ref.shape[0]

    # Hoist weight loads out of the time loop (loaded once per grid step).
    w_ih0 = wih0_ref[...]
    w_hh0 = whh0_ref[...]
    b0 = b0_ref[...]
    w_ih1 = wih1_ref[...]
    w_hh1 = whh1_ref[...]
    b1 = b1_ref[...]

    def cell(x_t, h, c, w_ih, w_hh, b):
        # Two fused matmuls produce all 4 gates (PyTorch order: i, f, g, o).
        g = (jnp.dot(x_t, w_ih, preferred_element_type=jnp.float32)
             + jnp.dot(h, w_hh, preferred_element_type=jnp.float32)
             + b)
        i_g = jax.nn.sigmoid(g[:, 0 * H:1 * H])
        f_g = jax.nn.sigmoid(g[:, 1 * H:2 * H])
        g_g = jnp.tanh(g[:, 2 * H:3 * H])
        o_g = jax.nn.sigmoid(g[:, 3 * H:4 * H])
        c_new = f_g * c + i_g * g_g
        h_new = o_g * jnp.tanh(c_new)
        return h_new, c_new

    h1 = jnp.zeros((TB, H), jnp.float32)
    c1 = jnp.zeros((TB, H), jnp.float32)
    h2 = jnp.zeros((TB, H), jnp.float32)
    c2 = jnp.zeros((TB, H), jnp.float32)

    # Sequential recurrence: static unroll (T is small).
    # TODO(synk): for long sequences switch to lax.fori_loop with (h, c) carry.
    for t in range(T):
        x_t = x_ref[t].astype(jnp.float32)            # (TB, D)
        h1, c1 = cell(x_t, h1, c1, w_ih0, w_hh0, b0)  # layer 0
        h2, c2 = cell(h1, h2, c2, w_ih1, w_hh1, b1)   # layer 1

    # fc on the last timestep of the top layer; fc weights are zero-padded to
    # 128 output lanes so this store is a full, unmasked lane-dense slab.
    out_ref[...] = (jnp.dot(h2, fcw_ref[...], preferred_element_type=jnp.float32)
                    + fcb_ref[...]).astype(out_ref.dtype)


def _full_spec(arr):
    n = arr.ndim
    return pl.BlockSpec(arr.shape, lambda b: (0,) * n)


def lstm_forward(x, params, tb=None):
    """x: (B, T, D) float32.  params: torch-convention LSTM + Linear weights."""
    (wih0, whh0, bih0, bhh0, wih1, whh1, bih1, bhh1, fcw, fcb) = params
    B, T, D = x.shape
    H = whh0.shape[1]
    G = 4 * H
    OUT = fcw.shape[0]
    OUTP = 128                       # lane-dense padded fc output width

    # Batch tile: multiple of 8 sublanes, capped at 256 (VMEM-friendly on v7x's
    # 64 MiB while still filling the MXU M dimension).
    if tb is None:
        tb = 256 if B >= 256 else max(8, ((B + 7) // 8) * 8)
    nb = -(-B // tb)
    B_pad = nb * tb

    # Repack weights for the (batch-on-sublanes, features-on-lanes) layout.
    wih0k = jnp.transpose(wih0)                         # (D, 4H)
    whh0k = jnp.transpose(whh0)                         # (H, 4H)
    b0k = (bih0 + bhh0).reshape(1, G)
    wih1k = jnp.transpose(wih1)                         # (H, 4H)
    whh1k = jnp.transpose(whh1)                         # (H, 4H)
    b1k = (bih1 + bhh1).reshape(1, G)
    fcwk = jnp.zeros((H, OUTP), jnp.float32).at[:, :OUT].set(jnp.transpose(fcw))
    fcbk = jnp.zeros((1, OUTP), jnp.float32).at[:, :OUT].set(fcb.reshape(1, OUT))

    # Pad the batch and go time-major so per-step slicing is a leading-dim index.
    xp = jnp.zeros((B_pad, T, D), x.dtype).at[:B].set(x)
    xk = jnp.transpose(xp, (1, 0, 2))                   # (T, B_pad, D)

    out = pl.pallas_call(
        _lstm_kernel,
        out_shape=jax.ShapeDtypeStruct((B_pad, OUTP), jnp.float32),
        grid_spec=pltpu.PrefetchScalarGridSpec(
            num_scalar_prefetch=0,
            grid=(nb,),
            in_specs=[pl.BlockSpec((T, tb, D), lambda b: (0, b, 0)),
                      _full_spec(wih0k), _full_spec(whh0k), _full_spec(b0k),
                      _full_spec(wih1k), _full_spec(whh1k), _full_spec(b1k),
                      _full_spec(fcwk), _full_spec(fcbk)],
            out_specs=pl.BlockSpec((tb, OUTP), lambda b: (b, 0)),
        ),
        compiler_params=pltpu.CompilerParams(dimension_semantics=("parallel",)),
    )(xk, wih0k, whh0k, b0k, wih1k, whh1k, b1k, fcwk, fcbk)

    return out[:B, :OUT]


def reference_forward(x, params):
    """Pure-JAX replica of the PyTorch LSTMModel forward."""
    (wih0, whh0, bih0, bhh0, wih1, whh1, bih1, bhh1, fcw, fcb) = params
    H = whh0.shape[1]
    hp = jax.lax.Precision.HIGHEST

    def run_layer(seq, wih, whh, bih, bhh):
        Bn, T, _ = seq.shape
        h = jnp.zeros((Bn, H), jnp.float32)
        c = jnp.zeros((Bn, H), jnp.float32)
        outs = []
        for t in range(T):
            g = (jnp.dot(seq[:, t, :], wih.T, precision=hp) + bih
                 + jnp.dot(h, whh.T, precision=hp) + bhh)
            i_g = jax.nn.sigmoid(g[:, 0 * H:1 * H])
            f_g = jax.nn.sigmoid(g[:, 1 * H:2 * H])
            g_g = jnp.tanh(g[:, 2 * H:3 * H])
            o_g = jax.nn.sigmoid(g[:, 3 * H:4 * H])
            c = f_g * c + i_g * g_g
            h = o_g * jnp.tanh(c)
            outs.append(h)
        return jnp.stack(outs, axis=1)

    s1 = run_layer(x, wih0, whh0, bih0, bhh0)
    s2 = run_layer(s1, wih1, whh1, bih1, bhh1)
    last = s2[:, -1, :]
    return jnp.dot(last, fcw.T, precision=hp) + fcb


if __name__ == "__main__":
    # Small config consistent with the module:
    # input_size=4, hidden_size=32, num_layers=2, seq_len=8, batch=2, out=1.
    B, T, D, H, OUT = 2, 8, 4, 32, 1

    key = jax.random.PRNGKey(0)
    ks = jax.random.split(key, 11)

    def uinit(k, shape, fan):
        bound = 1.0 / np.sqrt(fan)
        return jax.random.uniform(k, shape, jnp.float32, -bound, bound)

    params = (
        uinit(ks[1], (4 * H, D), H), uinit(ks[2], (4 * H, H), H),   # layer0 w_ih, w_hh
        uinit(ks[3], (4 * H,), H),   uinit(ks[4], (4 * H,), H),     # layer0 b_ih, b_hh
        uinit(ks[5], (4 * H, H), H), uinit(ks[6], (4 * H, H), H),   # layer1 w_ih, w_hh
        uinit(ks[7], (4 * H,), H),   uinit(ks[8], (4 * H,), H),     # layer1 b_ih, b_hh
        uinit(ks[9], (OUT, H), H),   uinit(ks[10], (OUT,), H),      # fc w, b
    )
    x = jax.random.normal(ks[0], (B, T, D), jnp.float32)

    y = jax.block_until_ready(lstm_forward(x, params))
    y_ref = reference_forward(x, params)
    assert y.shape == (B, OUT)
    np.testing.assert_allclose(np.asarray(y), np.asarray(y_ref), rtol=2e-3, atol=2e-3)
    print("KERNEL_OK")
</pallas_src>

<mosaic_0001>
module attributes {stable_mosaic.version = 11 : i64} {
  func.func @_lstm_kernel(%arg0: i32, %arg1: memref<8x8x4xf32, #tpu.memory_space<vmem>>, %arg2: memref<4x128xf32, #tpu.memory_space<vmem>>, %arg3: memref<32x128xf32, #tpu.memory_space<vmem>>, %arg4: memref<1x128xf32, #tpu.memory_space<vmem>>, %arg5: memref<32x128xf32, #tpu.memory_space<vmem>>, %arg6: memref<32x128xf32, #tpu.memory_space<vmem>>, %arg7: memref<1x128xf32, #tpu.memory_space<vmem>>, %arg8: memref<32x128xf32, #tpu.memory_space<vmem>>, %arg9: memref<1x128xf32, #tpu.memory_space<vmem>>, %arg10: memref<8x128xf32, #tpu.memory_space<vmem>>) attributes {dimension_semantics = [#tpu.dimension_semantics<parallel>], iteration_bounds = array<i64: 1>, scalar_prefetch = 0 : i64, scratch_operands = 0 : i64, tpu.core_type = #tpu.core_type<tc>, window_params = [{transform_indices = @transform_0, window_bounds = array<i64: 8, 8, 4>}, {pipeline_mode = #tpu.pipeline_mode<synchronous>, transform_indices = @transform_1, window_bounds = array<i64: 4, 128>}, {pipeline_mode = #tpu.pipeline_mode<synchronous>, transform_indices = @transform_2, window_bounds = array<i64: 32, 128>}, {pipeline_mode = #tpu.pipeline_mode<synchronous>, transform_indices = @transform_3, window_bounds = array<i64: 1, 128>}, {pipeline_mode = #tpu.pipeline_mode<synchronous>, transform_indices = @transform_4, window_bounds = array<i64: 32, 128>}, {pipeline_mode = #tpu.pipeline_mode<synchronous>, transform_indices = @transform_5, window_bounds = array<i64: 32, 128>}, {pipeline_mode = #tpu.pipeline_mode<synchronous>, transform_indices = @transform_6, window_bounds = array<i64: 1, 128>}, {pipeline_mode = #tpu.pipeline_mode<synchronous>, transform_indices = @transform_7, window_bounds = array<i64: 32, 128>}, {pipeline_mode = #tpu.pipeline_mode<synchronous>, transform_indices = @transform_8, window_bounds = array<i64: 1, 128>}, {transform_indices = @transform_9, window_bounds = array<i64: 8, 128>}]} {
    %c0 = arith.constant 0 : index
    %c0_0 = arith.constant 0 : index
    %0 = vector.load %arg2[%c0, %c0_0] : memref<4x128xf32, #tpu.memory_space<vmem>>, vector<4x128xf32>
    %c0_1 = arith.constant 0 : index
    %c0_2 = arith.constant 0 : index
    %1 = vector.load %arg3[%c0_1, %c0_2] : memref<32x128xf32, #tpu.memory_space<vmem>>, vector<32x128xf32>
    %c0_3 = arith.constant 0 : index
    %c0_4 = arith.constant 0 : index
    %2 = vector.load %arg4[%c0_3, %c0_4] : memref<1x128xf32, #tpu.memory_space<vmem>>, vector<1x128xf32>
    %c0_5 = arith.constant 0 : index
    %c0_6 = arith.constant 0 : index
    %3 = vector.load %arg5[%c0_5, %c0_6] : memref<32x128xf32, #tpu.memory_space<vmem>>, vector<32x128xf32>
    %c0_7 = arith.constant 0 : index
    %c0_8 = arith.constant 0 : index
    %4 = vector.load %arg6[%c0_7, %c0_8] : memref<32x128xf32, #tpu.memory_space<vmem>>, vector<32x128xf32>
    %c0_9 = arith.constant 0 : index
    %c0_10 = arith.constant 0 : index
    %5 = vector.load %arg7[%c0_9, %c0_10] : memref<1x128xf32, #tpu.memory_space<vmem>>, vector<1x128xf32>
    %cst = arith.constant 0.000000e+00 : f32
    %6 = vector.broadcast %cst : f32 to vector<8x32xf32>
    %cst_11 = arith.constant 0.000000e+00 : f32
    %7 = vector.broadcast %cst_11 : f32 to vector<8x32xf32>
    %cst_12 = arith.constant 0.000000e+00 : f32
    %8 = vector.broadcast %cst_12 : f32 to vector<8x32xf32>
    %cst_13 = arith.constant 0.000000e+00 : f32
    %9 = vector.broadcast %cst_13 : f32 to vector<8x32xf32>
    %c0_14 = arith.constant 0 : index
    %c0_15 = arith.constant 0 : index
    %c0_16 = arith.constant 0 : index
    %10 = vector.load %arg1[%c0_14, %c0_15, %c0_16] : memref<8x8x4xf32, #tpu.memory_space<vmem>>, vector<1x8x4xf32>
    %11 = vector.shape_cast %10 : vector<1x8x4xf32> to vector<8x4xf32>
    %cst_17 = arith.constant dense<0.000000e+00> : vector<8x128xf32>
    %12 = tpu.matmul %11, %0, %cst_17 {dimension_numbers = #tpu.dot_dimension_numbers<[1], [0], [0], [1], [0, 0, 1, 1], [], []>} : vector<8x4xf32>, vector<4x128xf32>, vector<8x128xf32> -> vector<8x128xf32>
    %cst_18 = arith.constant dense<0.000000e+00> : vector<8x128xf32>
    %13 = tpu.matmul %6, %1, %cst_18 {dimension_numbers = #tpu.dot_dimension_numbers<[1], [0], [0], [1], [0, 0, 1, 1], [], []>} : vector<8x32xf32>, vector<32x128xf32>, vector<8x128xf32> -> vector<8x128xf32>
    %14 = arith.addf %12, %13 : vector<8x128xf32>
    %15 = vector.broadcast %2 : vector<1x128xf32> to vector<8x128xf32>
    %16 = arith.addf %14, %15 : vector<8x128xf32>
    %17 = vector.extract_strided_slice %16 {offsets = [0, 0], sizes = [8, 32], strides = [1, 1]} : vector<8x128xf32> to vector<8x32xf32>
    %18 = arith.negf %17 : vector<8x32xf32>
    %19 = math.exp %18 : vector<8x32xf32>
    %cst_19 = arith.constant 1.000000e+00 : f32
    %20 = vector.broadcast %cst_19 : f32 to vector<8x32xf32>
    %21 = arith.addf %20, %19 : vector<8x32xf32>
    %22 = arith.divf %20, %21 : vector<8x32xf32>
    %23 = vector.extract_strided_slice %16 {offsets = [0, 32], sizes = [8, 32], strides = [1, 1]} : vector<8x128xf32> to vector<8x32xf32>
    %24 = arith.negf %23 : vector<8x32xf32>
    %25 = math.exp %24 : vector<8x32xf32>
    %cst_20 = arith.constant 1.000000e+00 : f32
    %26 = vector.broadcast %cst_20 : f32 to vector<8x32xf32>
    %27 = arith.addf %26, %25 : vector<8x32xf32>
    %28 = arith.divf %26, %27 : vector<8x32xf32>
    %29 = vector.extract_strided_slice %16 {offsets = [0, 64], sizes = [8, 32], strides = [1, 1]} : vector<8x128xf32> to vector<8x32xf32>
    %30 = math.tanh %29 : vector<8x32xf32>
    %31 = vector.extract_strided_slice %16 {offsets = [0, 96], sizes = [8, 32], strides = [1, 1]} : vector<8x128xf32> to vector<8x32xf32>
    %32 = arith.negf %31 : vector<8x32xf32>
    %33 = math.exp %32 : vector<8x32xf32>
    %cst_21 = arith.constant 1.000000e+00 : f32
    %34 = vector.broadcast %cst_21 : f32 to vector<8x32xf32>
    %35 = arith.addf %34, %33 : vector<8x32xf32>
    %36 = arith.divf %34, %35 : vector<8x32xf32>
    %37 = arith.mulf %28, %7 : vector<8x32xf32>
    %38 = arith.mulf %22, %30 : vector<8x32xf32>
    %39 = arith.addf %37, %38 : vector<8x32xf32>
    %40 = math.tanh %39 : vector<8x32xf32>
    %41 = arith.mulf %36, %40 : vector<8x32xf32>
    %cst_22 = arith.constant dense<0.000000e+00> : vector<8x128xf32>
    %42 = tpu.matmul %41, %3, %cst_22 {dimension_numbers = #tpu.dot_dimension_numbers<[1], [0], [0], [1], [0, 0, 1, 1], [], []>} : vector<8x32xf32>, vector<32x128xf32>, vector<8x128xf32> -> vector<8x128xf32>
    %cst_23 = arith.constant dense<0.000000e+00> : vector<8x128xf32>
    %43 = tpu.matmul %8, %4, %cst_23 {dimension_numbers = #tpu.dot_dimension_numbers<[1], [0], [0], [1], [0, 0, 1, 1], [], []>} : vector<8x32xf32>, vector<32x128xf32>, vector<8x128xf32> -> vector<8x128xf32>
    %44 = arith.addf %42, %43 : vector<8x128xf32>
    %45 = vector.broadcast %5 : vector<1x128xf32> to vector<8x128xf32>
    %46 = arith.addf %44, %45 : vector<8x128xf32>
    %47 = vector.extract_strided_slice %46 {offsets = [0, 0], sizes = [8, 32], strides = [1, 1]} : vector<8x128xf32> to vector<8x32xf32>
    %48 = arith.negf %47 : vector<8x32xf32>
    %49 = math.exp %48 : vector<8x32xf32>
    %cst_24 = arith.constant 1.000000e+00 : f32
    %50 = vector.broadcast %cst_24 : f32 to vector<8x32xf32>
    %51 = arith.addf %50, %49 : vector<8x32xf32>
    %52 = arith.divf %50, %51 : vector<8x32xf32>
    %53 = vector.extract_strided_slice %46 {offsets = [0, 32], sizes = [8, 32], strides = [1, 1]} : vector<8x128xf32> to vector<8x32xf32>
    %54 = arith.negf %53 : vector<8x32xf32>
    %55 = math.exp %54 : vector<8x32xf32>
    %cst_25 = arith.constant 1.000000e+00 : f32
    %56 = vector.broadcast %cst_25 : f32 to vector<8x32xf32>
    %57 = arith.addf %56, %55 : vector<8x32xf32>
    %58 = arith.divf %56, %57 : vector<8x32xf32>
    %59 = vector.extract_strided_slice %46 {offsets = [0, 64], sizes = [8, 32], strides = [1, 1]} : vector<8x128xf32> to vector<8x32xf32>
    %60 = math.tanh %59 : vector<8x32xf32>
    %61 = vector.extract_strided_slice %46 {offsets = [0, 96], sizes = [8, 32], strides = [1, 1]} : vector<8x128xf32> to vector<8x32xf32>
    %62 = arith.negf %61 : vector<8x32xf32>
    %63 = math.exp %62 : vector<8x32xf32>
    %cst_26 = arith.constant 1.000000e+00 : f32
    %64 = vector.broadcast %cst_26 : f32 to vector<8x32xf32>
    %65 = arith.addf %64, %63 : vector<8x32xf32>
    %66 = arith.divf %64, %65 : vector<8x32xf32>
    %67 = arith.mulf %58, %9 : vector<8x32xf32>
    %68 = arith.mulf %52, %60 : vector<8x32xf32>
    %69 = arith.addf %67, %68 : vector<8x32xf32>
    %70 = math.tanh %69 : vector<8x32xf32>
    %71 = arith.mulf %66, %70 : vector<8x32xf32>
    %c1 = arith.constant 1 : index
    %c0_27 = arith.constant 0 : index
    %c0_28 = arith.constant 0 : index
    %72 = vector.load %arg1[%c1, %c0_27, %c0_28] : memref<8x8x4xf32, #tpu.memory_space<vmem>>, vector<1x8x4xf32>
    %73 = vector.shape_cast %72 : vector<1x8x4xf32> to vector<8x4xf32>
    %cst_29 = arith.constant dense<0.000000e+00> : vector<8x128xf32>
    %74 = tpu.matmul %73, %0, %cst_29 {dimension_numbers = #tpu.dot_dimension_numbers<[1], [0], [0], [1], [0, 0, 1, 1], [], []>} : vector<8x4xf32>, vector<4x128xf32>, vector<8x128xf32> -> vector<8x128xf32>
    %cst_30 = arith.constant dense<0.000000e+00> : vector<8x128xf32>
    %75 = tpu.matmul %41, %1, %cst_30 {dimension_numbers = #tpu.dot_dimension_numbers<[1], [0], [0], [1], [0, 0, 1, 1], [], []>} : vector<8x32xf32>, vector<32x128xf32>, vector<8x128xf32> -> vector<8x128xf32>
    %76 = arith.addf %74, %75 : vector<8x128xf32>
    %77 = vector.broadcast %2 : vector<1x128xf32> to vector<8x128xf32>
    %78 = arith.addf %76, %77 : vector<8x128xf32>
    %79 = vector.extract_strided_slice %78 {offsets = [0, 0], sizes = [8, 32], strides = [1, 1]} : vector<8x128xf32> to vector<8x32xf32>
    %80 = arith.negf %79 : vector<8x32xf32>
    %81 = math.exp %80 : vector<8x32xf32>
    %cst_31 = arith.constant 1.000000e+00 : f32
    %82 = vector.broadcast %cst_31 : f32 to vector<8x32xf32>
    %83 = arith.addf %82, %81 : vector<8x32xf32>
    %84 = arith.divf %82, %83 : vector<8x32xf32>
    %85 = vector.extract_strided_slice %78 {offsets = [0, 32], sizes = [8, 32], strides = [1, 1]} : vector<8x128xf32> to vector<8x32xf32>
    %86 = arith.negf %85 : vector<8x32xf32>
    %87 = math.exp %86 : vector<8x32xf32>
    %cst_32 = arith.constant 1.000000e+00 : f32
    %88 = vector.broadcast %cst_32 : f32 to vector<8x32xf32>
    %89 = arith.addf %88, %87 : vector<8x32xf32>
    %90 = arith.divf %88, %89 : vector<8x32xf32>
    %91 = vector.extract_strided_slice %78 {offsets = [0, 64], sizes = [8, 32], strides = [1, 1]} : vector<8x128xf32> to vector<8x32xf32>
    %92 = math.tanh %91 : vector<8x32xf32>
    %93 = vector.extract_strided_slice %78 {offsets = [0, 96], sizes = [8, 32], strides = [1, 1]} : vector<8x128xf32> to vector<8x32xf32>
    %94 = arith.negf %93 : vector<8x32xf32>
    %95 = math.exp %94 : vector<8x32xf32>
    %cst_33 = arith.constant 1.000000e+00 : f32
    %96 = vector.broadcast %cst_33 : f32 to vector<8x32xf32>
    %97 = arith.addf %96, %95 : vector<8x32xf32>
    %98 = arith.divf %96, %97 : vector<8x32xf32>
    %99 = arith.mulf %90, %39 : vector<8x32xf32>
    %100 = arith.mulf %84, %92 : vector<8x32xf32>
    %101 = arith.addf %99, %100 : vector<8x32xf32>
    %102 = math.tanh %101 : vector<8x32xf32>
    %103 = arith.mulf %98, %102 : vector<8x32xf32>
    %cst_34 = arith.constant dense<0.000000e+00> : vector<8x128xf32>
    %104 = tpu.matmul %103, %3, %cst_34 {dimension_numbers = #tpu.dot_dimension_numbers<[1], [0], [0], [1], [0, 0, 1, 1], [], []>} : vector<8x32xf32>, vector<32x128xf32>, vector<8x128xf32> -> vector<8x128xf32>
    %cst_35 = arith.constant dense<0.000000e+00> : vector<8x128xf32>
    %105 = tpu.matmul %71, %4, %cst_35 {dimension_numbers = #tpu.dot_dimension_numbers<[1], [0], [0], [1], [0, 0, 1, 1], [], []>} : vector<8x32xf32>, vector<32x128xf32>, vector<8x128xf32> -> vector<8x128xf32>
    %106 = arith.addf %104, %105 : vector<8x128xf32>
    %107 = vector.broadcast %5 : vector<1x128xf32> to vector<8x128xf32>
    %108 = arith.addf %106, %107 : vector<8x128xf32>
    %109 = vector.extract_strided_slice %108 {offsets = [0, 0], sizes = [8, 32], strides = [1, 1]} : vector<8x128xf32> to vector<8x32xf32>
    %110 = arith.negf %109 : vector<8x32xf32>
    %111 = math.exp %110 : vector<8x32xf32>
    %cst_36 = arith.constant 1.000000e+00 : f32
    %112 = vector.broadcast %cst_36 : f32 to vector<8x32xf32>
    %113 = arith.addf %112, %111 : vector<8x32xf32>
    %114 = arith.divf %112, %113 : vector<8x32xf32>
    %115 = vector.extract_strided_slice %108 {offsets = [0, 32], sizes = [8, 32], strides = [1, 1]} : vector<8x128xf32> to vector<8x32xf32>
    %116 = arith.negf %115 : vector<8x32xf32>
    %117 = math.exp %116 : vector<8x32xf32>
    %cst_37 = arith.constant 1.000000e+00 : f32
    %118 = vector.broadcast %cst_37 : f32 to vector<8x32xf32>
    %119 = arith.addf %118, %117 : vector<8x32xf32>
    %120 = arith.divf %118, %119 : vector<8x32xf32>
    %121 = vector.extract_strided_slice %108 {offsets = [0, 64], sizes = [8, 32], strides = [1, 1]} : vector<8x128xf32> to vector<8x32xf32>
    %122 = math.tanh %121 : vector<8x32xf32>
    %123 = vector.extract_strided_slice %108 {offsets = [0, 96], sizes = [8, 32], strides = [1, 1]} : vector<8x128xf32> to vector<8x32xf32>
    %124 = arith.negf %123 : vector<8x32xf32>
    %125 = math.exp %124 : vector<8x32xf32>
    %cst_38 = arith.constant 1.000000e+00 : f32
    %126 = vector.broadcast %cst_38 : f32 to vector<8x32xf32>
    %127 = arith.addf %126, %125 : vector<8x32xf32>
    %128 = arith.divf %126, %127 : vector<8x32xf32>
    %129 = arith.mulf %120, %69 : vector<8x32xf32>
    %130 = arith.mulf %114, %122 : vector<8x32xf32>
    %131 = arith.addf %129, %130 : vector<8x32xf32>
    %132 = math.tanh %131 : vector<8x32xf32>
    %133 = arith.mulf %128, %132 : vector<8x32xf32>
    %c2 = arith.constant 2 : index
    %c0_39 = arith.constant 0 : index
    %c0_40 = arith.constant 0 : index
    %134 = vector.load %arg1[%c2, %c0_39, %c0_40] : memref<8x8x4xf32, #tpu.memory_space<vmem>>, vector<1x8x4xf32>
    %135 = vector.shape_cast %134 : vector<1x8x4xf32> to vector<8x4xf32>
    %cst_41 = arith.constant dense<0.000000e+00> : vector<8x128xf32>
    %136 = tpu.matmul %135, %0, %cst_41 {dimension_numbers = #tpu.dot_dimension_numbers<[1], [0], [0], [1], [0, 0, 1, 1], [], []>} : vector<8x4xf32>, vector<4x128xf32>, vector<8x128xf32> -> vector<8x128xf32>
    %cst_42 = arith.constant dense<0.000000e+00> : vector<8x128xf32>
    %137 = tpu.matmul %103, %1, %cst_42 {dimension_numbers = #tpu.dot_dimension_numbers<[1], [0], [0], [1], [0, 0, 1, 1], [], []>} : vector<8x32xf32>, vector<32x128xf32>, vector<8x128xf32> -> vector<8x128xf32>
    %138 = arith.addf %136, %137 : vector<8x128xf32>
    %139 = vector.broadcast %2 : vector<1x128xf32> to vector<8x128xf32>
    %140 = arith.addf %138, %139 : vector<8x128xf32>
    %141 = vector.extract_strided_slice %140 {offsets = [0, 0], sizes = [8, 32], strides = [1, 1]} : vector<8x128xf32> to vector<8x32xf32>
    %142 = arith.negf %141 : vector<8x32xf32>
    %143 = math.exp %142 : vector<8x32xf32>
    %cst_43 = arith.constant 1.000000e+00 : f32
    %144 = vector.broadcast %cst_43 : f32 to vector<8x32xf32>
    %145 = arith.addf %144, %143 : vector<8x32xf32>
    %146 = arith.divf %144, %145 : vector<8x32xf32>
    %147 = vector.extract_strided_slice %140 {offsets = [0, 32], sizes = [8, 32], strides = [1, 1]} : vector<8x128xf32> to vector<8x32xf32>
    %148 = arith.negf %147 : vector<8x32xf32>
    %149 = math.exp %148 : vector<8x32xf32>
    %cst_44 = arith.constant 1.000000e+00 : f32
    %150 = vector.broadcast %cst_44 : f32 to vector<8x32xf32>
    %151 = arith.addf %150, %149 : vector<8x32xf32>
    %152 = arith.divf %150, %151 : vector<8x32xf32>
    %153 = vector.extract_strided_slice %140 {offsets = [0, 64], sizes = [8, 32], strides = [1, 1]} : vector<8x128xf32> to vector<8x32xf32>
    %154 = math.tanh %153 : vector<8x32xf32>
    %155 = vector.extract_strided_slice %140 {offsets = [0, 96], sizes = [8, 32], strides = [1, 1]} : vector<8x128xf32> to vector<8x32xf32>
    %156 = arith.negf %155 : vector<8x32xf32>
    %157 = math.exp %156 : vector<8x32xf32>
    %cst_45 = arith.constant 1.000000e+00 : f32
    %158 = vector.broadcast %cst_45 : f32 to vector<8x32xf32>
    %159 = arith.addf %158, %157 : vector<8x32xf32>
    %160 = arith.divf %158, %159 : vector<8x32xf32>
    %161 = arith.mulf %152, %101 : vector<8x32xf32>
    %162 = arith.mulf %146, %154 : vector<8x32xf32>
    %163 = arith.addf %161, %162 : vector<8x32xf32>
    %164 = math.tanh %163 : vector<8x32xf32>
    %165 = arith.mulf %160, %164 : vector<8x32xf32>
    %cst_46 = arith.constant dense<0.000000e+00> : vector<8x128xf32>
    %166 = tpu.matmul %165, %3, %cst_46 {dimension_numbers = #tpu.dot_dimension_numbers<[1], [0], [0], [1], [0, 0, 1, 1], [], []>} : vector<8x32xf32>, vector<32x128xf32>, vector<8x128xf32> -> vector<8x128xf32>
    %cst_47 = arith.constant dense<0.000000e+00> : vector<8x128xf32>
    %167 = tpu.matmul %133, %4, %cst_47 {dimension_numbers = #tpu.dot_dimension_numbers<[1], [0], [0], [1], [0, 0, 1, 1], [], []>} : vector<8x32xf32>, vector<32x128xf32>, vector<8x128xf32> -> vector<8x128xf32>
    %168 = arith.addf %166, %167 : vector<8x128xf32>
    %169 = vector.broadcast %5 : vector<1x128xf32> to vector<8x128xf32>
    %170 = arith.addf %168, %169 : vector<8x128xf32>
    %171 = vector.extract_strided_slice %170 {offsets = [0, 0], sizes = [8, 32], strides = [1, 1]} : vector<8x128xf32> to vector<8x32xf32>
    %172 = arith.negf %171 : vector<8x32xf32>
    %173 = math.exp %172 : vector<8x32xf32>
    %cst_48 = arith.constant 1.000000e+00 : f32
    %174 = vector.broadcast %cst_48 : f32 to vector<8x32xf32>
    %175 = arith.addf %174, %173 : vector<8x32xf32>
    %176 = arith.divf %174, %175 : vector<8x32xf32>
    %177 = vector.extract_strided_slice %170 {offsets = [0, 32], sizes = [8, 32], strides = [1, 1]} : vector<8x128xf32> to vector<8x32xf32>
    %178 = arith.negf %177 : vector<8x32xf32>
    %179 = math.exp %178 : vector<8x32xf32>
    %cst_49 = arith.constant 1.000000e+00 : f32
    %180 = vector.broadcast %cst_49 : f32 to vector<8x32xf32>
    %181 = arith.addf %180, %179 : vector<8x32xf32>
    %182 = arith.divf %180, %181 : vector<8x32xf32>
    %183 = vector.extract_strided_slice %170 {offsets = [0, 64], sizes = [8, 32], strides = [1, 1]} : vector<8x128xf32> to vector<8x32xf32>
    %184 = math.tanh %183 : vector<8x32xf32>
    %185 = vector.extract_strided_slice %170 {offsets = [0, 96], sizes = [8, 32], strides = [1, 1]} : vector<8x128xf32> to vector<8x32xf32>
    %186 = arith.negf %185 : vector<8x32xf32>
    %187 = math.exp %186 : vector<8x32xf32>
    %cst_50 = arith.constant 1.000000e+00 : f32
    %188 = vector.broadcast %cst_50 : f32 to vector<8x32xf32>
    %189 = arith.addf %188, %187 : vector<8x32xf32>
    %190 = arith.divf %188, %189 : vector<8x32xf32>
    %191 = arith.mulf %182, %131 : vector<8x32xf32>
    %192 = arith.mulf %176, %184 : vector<8x32xf32>
    %193 = arith.addf %191, %192 : vector<8x32xf32>
    %194 = math.tanh %193 : vector<8x32xf32>
    %195 = arith.mulf %190, %194 : vector<8x32xf32>
    %c3 = arith.constant 3 : index
    %c0_51 = arith.constant 0 : index
    %c0_52 = arith.constant 0 : index
    %196 = vector.load %arg1[%c3, %c0_51, %c0_52] : memref<8x8x4xf32, #tpu.memory_space<vmem>>, vector<1x8x4xf32>
    %197 = vector.shape_cast %196 : vector<1x8x4xf32> to vector<8x4xf32>
    %cst_53 = arith.constant dense<0.000000e+00> : vector<8x128xf32>
    %198 = tpu.matmul %197, %0, %cst_53 {dimension_numbers = #tpu.dot_dimension_numbers<[1], [0], [0], [1], [0, 0, 1, 1], [], []>} : vector<8x4xf32>, vector<4x128xf32>, vector<8x128xf32> -> vector<8x128xf32>
    %cst_54 = arith.constant dense<0.000000e+00> : vector<8x128xf32>
    %199 = tpu.matmul %165, %1, %cst_54 {dimension_numbers = #tpu.dot_dimension_numbers<[1], [0], [0], [1], [0, 0, 1, 1], [], []>} : vector<8x32xf32>, vector<32x128xf32>, vector<8x128xf32> -> vector<8x128xf32>
    %200 = arith.addf %198, %199 : vector<8x128xf32>
    %201 = vector.broadcast %2 : vector<1x128xf32> to vector<8x128xf32>
    %202 = arith.addf %200, %201 : vector<8x128xf32>
    %203 = vector.extract_strided_slice %202 {offsets = [0, 0], sizes = [8, 32], strides = [1, 1]} : vector<8x128xf32> to vector<8x32xf32>
    %204 = arith.negf %203 : vector<8x32xf32>
    %205 = math.exp %204 : vector<8x32xf32>
    %cst_55 = arith.constant 1.000000e+00 : f32
    %206 = vector.broadcast %cst_55 : f32 to vector<8x32xf32>
    %207 = arith.addf %206, %205 : vector<8x32xf32>
    %208 = arith.divf %206, %207 : vector<8x32xf32>
    %209 = vector.extract_strided_slice %202 {offsets = [0, 32], sizes = [8, 32], strides = [1, 1]} : vector<8x128xf32> to vector<8x32xf32>
    %210 = arith.negf %209 : vector<8x32xf32>
    %211 = math.exp %210 : vector<8x32xf32>
    %cst_56 = arith.constant 1.000000e+00 : f32
    %212 = vector.broadcast %cst_56 : f32 to vector<8x32xf32>
    %213 = arith.addf %212, %211 : vector<8x32xf32>
    %214 = arith.divf %212, %213 : vector<8x32xf32>
    %215 = vector.extract_strided_slice %202 {offsets = [0, 64], sizes = [8, 32], strides = [1, 1]} : vector<8x128xf32> to vector<8x32xf32>
    %216 = math.tanh %215 : vector<8x32xf32>
    %217 = vector.extract_strided_slice %202 {offsets = [0, 96], sizes = [8, 32], strides = [1, 1]} : vector<8x128xf32> to vector<8x32xf32>
    %218 = arith.negf %217 : vector<8x32xf32>
    %219 = math.exp %218 : vector<8x32xf32>
    %cst_57 = arith.constant 1.000000e+00 : f32
    %220 = vector.broadcast %cst_57 : f32 to vector<8x32xf32>
    %221 = arith.addf %220, %219 : vector<8x32xf32>
    %222 = arith.divf %220, %221 : vector<8x32xf32>
    %223 = arith.mulf %214, %163 : vector<8x32xf32>
    %224 = arith.mulf %208, %216 : vector<8x32xf32>
    %225 = arith.addf %223, %224 : vector<8x32xf32>
    %226 = math.tanh %225 : vector<8x32xf32>
    %227 = arith.mulf %222, %226 : vector<8x32xf32>
    %cst_58 = arith.constant dense<0.000000e+00> : vector<8x128xf32>
    %228 = tpu.matmul %227, %3, %cst_58 {dimension_numbers = #tpu.dot_dimension_numbers<[1], [0], [0], [1], [0, 0, 1, 1], [], []>} : vector<8x32xf32>, vector<32x128xf32>, vector<8x128xf32> -> vector<8x128xf32>
    %cst_59 = arith.constant dense<0.000000e+00> : vector<8x128xf32>
    %229 = tpu.matmul %195, %4, %cst_59 {dimension_numbers = #tpu.dot_dimension_numbers<[1], [0], [0], [1], [0, 0, 1, 1], [], []>} : vector<8x32xf32>, vector<32x128xf32>, vector<8x128xf32> -> vector<8x128xf32>
    %230 = arith.addf %228, %229 : vector<8x128xf32>
    %231 = vector.broadcast %5 : vector<1x128xf32> to vector<8x128xf32>
    %232 = arith.addf %230, %231 : vector<8x128xf32>
    %233 = vector.extract_strided_slice %232 {offsets = [0, 0], sizes = [8, 32], strides = [1, 1]} : vector<8x128xf32> to vector<8x32xf32>
    %234 = arith.negf %233 : vector<8x32xf32>
    %235 = math.exp %234 : vector<8x32xf32>
    %cst_60 = arith.constant 1.000000e+00 : f32
    %236 = vector.broadcast %cst_60 : f32 to vector<8x32xf32>
    %237 = arith.addf %236, %235 : vector<8x32xf32>
    %238 = arith.divf %236, %237 : vector<8x32xf32>
    %239 = vector.extract_strided_slice %232 {offsets = [0, 32], sizes = [8, 32], strides = [1, 1]} : vector<8x128xf32> to vector<8x32xf32>
    %240 = arith.negf %239 : vector<8x32xf32>
    %241 = math.exp %240 : vector<8x32xf32>
    %cst_61 = arith.constant 1.000000e+00 : f32
    %242 = vector.broadcast %cst_61 : f32 to vector<8x32xf32>
    %243 = arith.addf %242, %241 : vector<8x32xf32>
    %244 = arith.divf %242, %243 : vector<8x32xf32>
    %245 = vector.extract_strided_slice %232 {offsets = [0, 64], sizes = [8, 32], strides = [1, 1]} : vector<8x128xf32> to vector<8x32xf32>
    %246 = math.tanh %245 : vector<8x32xf32>
    %247 = vector.extract_strided_slice %232 {offsets = [0, 96], sizes = [8, 32], strides = [1, 1]} : vector<8x128xf32> to vector<8x32xf32>
    %248 = arith.negf %247 : vector<8x32xf32>
    %249 = math.exp %248 : vector<8x32xf32>
    %cst_62 = arith.constant 1.000000e+00 : f32
    %250 = vector.broadcast %cst_62 : f32 to vector<8x32xf32>
    %251 = arith.addf %250, %249 : vector<8x32xf32>
    %252 = arith.divf %250, %251 : vector<8x32xf32>
    %253 = arith.mulf %244, %193 : vector<8x32xf32>
    %254 = arith.mulf %238, %246 : vector<8x32xf32>
    %255 = arith.addf %253, %254 : vector<8x32xf32>
    %256 = math.tanh %255 : vector<8x32xf32>
    %257 = arith.mulf %252, %256 : vector<8x32xf32>
    %c4 = arith.constant 4 : index
    %c0_63 = arith.constant 0 : index
    %c0_64 = arith.constant 0 : index
    %258 = vector.load %arg1[%c4, %c0_63, %c0_64] : memref<8x8x4xf32, #tpu.memory_space<vmem>>, vector<1x8x4xf32>
    %259 = vector.shape_cast %258 : vector<1x8x4xf32> to vector<8x4xf32>
    %cst_65 = arith.constant dense<0.000000e+00> : vector<8x128xf32>
    %260 = tpu.matmul %259, %0, %cst_65 {dimension_numbers = #tpu.dot_dimension_numbers<[1], [0], [0], [1], [0, 0, 1, 1], [], []>} : vector<8x4xf32>, vector<4x128xf32>, vector<8x128xf32> -> vector<8x128xf32>
    %cst_66 = arith.constant dense<0.000000e+00> : vector<8x128xf32>
    %261 = tpu.matmul %227, %1, %cst_66 {dimension_numbers = #tpu.dot_dimension_numbers<[1], [0], [0], [1], [0, 0, 1, 1], [], []>} : vector<8x32xf32>, vector<32x128xf32>, vector<8x128xf32> -> vector<8x128xf32>
    %262 = arith.addf %260, %261 : vector<8x128xf32>
    %263 = vector.broadcast %2 : vector<1x128xf32> to vector<8x128xf32>
    %264 = arith.addf %262, %263 : vector<8x128xf32>
    %265 = vector.extract_strided_slice %264 {offsets = [0, 0], sizes = [8, 32], strides = [1, 1]} : vector<8x128xf32> to vector<8x32xf32>
    %266 = arith.negf %265 : vector<8x32xf32>
    %267 = math.exp %266 : vector<8x32xf32>
    %cst_67 = arith.constant 1.000000e+00 : f32
    %268 = vector.broadcast %cst_67 : f32 to vector<8x32xf32>
    %269 = arith.addf %268, %267 : vector<8x32xf32>
    %270 = arith.divf %268, %269 : vector<8x32xf32>
    %271 = vector.extract_strided_slice %264 {offsets = [0, 32], sizes = [8, 32], strides = [1, 1]} : vector<8x128xf32> to vector<8x32xf32>
    %272 = arith.negf %271 : vector<8x32xf32>
    %273 = math.exp %272 : vector<8x32xf32>
    %cst_68 = arith.constant 1.000000e+00 : f32
    %274 = vector.broadcast %cst_68 : f32 to vector<8x32xf32>
    %275 = arith.addf %274, %273 : vector<8x32xf32>
    %276 = arith.divf %274, %275 : vector<8x32xf32>
    %277 = vector.extract_strided_slice %264 {offsets = [0, 64], sizes = [8, 32], strides = [1, 1]} : vector<8x128xf32> to vector<8x32xf32>
    %278 = math.tanh %277 : vector<8x32xf32>
    %279 = vector.extract_strided_slice %264 {offsets = [0, 96], sizes = [8, 32], strides = [1, 1]} : vector<8x128xf32> to vector<8x32xf32>
    %280 = arith.negf %279 : vector<8x32xf32>
    %281 = math.exp %280 : vector<8x32xf32>
    %cst_69 = arith.constant 1.000000e+00 : f32
    %282 = vector.broadcast %cst_69 : f32 to vector<8x32xf32>
    %283 = arith.addf %282, %281 : vector<8x32xf32>
    %284 = arith.divf %282, %283 : vector<8x32xf32>
    %285 = arith.mulf %276, %225 : vector<8x32xf32>
    %286 = arith.mulf %270, %278 : vector<8x32xf32>
    %287 = arith.addf %285, %286 : vector<8x32xf32>
    %288 = math.tanh %287 : vector<8x32xf32>
    %289 = arith.mulf %284, %288 : vector<8x32xf32>
    %cst_70 = arith.constant dense<0.000000e+00> : vector<8x128xf32>
    %290 = tpu.matmul %289, %3, %cst_70 {dimension_numbers = #tpu.dot_dimension_numbers<[1], [0], [0], [1], [0, 0, 1, 1], [], []>} : vector<8x32xf32>, vector<32x128xf32>, vector<8x128xf32> -> vector<8x128xf32>
    %cst_71 = arith.constant dense<0.000000e+00> : vector<8x128xf32>
    %291 = tpu.matmul %257, %4, %cst_71 {dimension_numbers = #tpu.dot_dimension_numbers<[1], [0], [0], [1], [0, 0, 1, 1], [], []>} : vector<8x32xf32>, vector<32x128xf32>, vector<8x128xf32> -> vector<8x128xf32>
    %292 = arith.addf %290, %291 : vector<8x128xf32>
    %293 = vector.broadcast %5 : vector<1x128xf32> to vector<8x128xf32>
    %294 = arith.addf %292, %293 : vector<8x128xf32>
    %295 = vector.extract_strided_slice %294 {offsets = [0, 0], sizes = [8, 32], strides = [1, 1]} : vector<8x128xf32> to vector<8x32xf32>
    %296 = arith.negf %295 : vector<8x32xf32>
    %297 = math.exp %296 : vector<8x32xf32>
    %cst_72 = arith.constant 1.000000e+00 : f32
    %298 = vector.broadcast %cst_72 : f32 to vector<8x32xf32>
    %299 = arith.addf %298, %297 : vector<8x32xf32>
    %300 = arith.divf %298, %299 : vector<8x32xf32>
    %301 = vector.extract_strided_slice %294 {offsets = [0, 32], sizes = [8, 32], strides = [1, 1]} : vector<8x128xf32> to vector<8x32xf32>
    %302 = arith.negf %301 : vector<8x32xf32>
    %303 = math.exp %302 : vector<8x32xf32>
    %cst_73 = arith.constant 1.000000e+00 : f32
    %304 = vector.broadcast %cst_73 : f32 to vector<8x32xf32>
    %305 = arith.addf %304, %303 : vector<8x32xf32>
    %306 = arith.divf %304, %305 : vector<8x32xf32>
    %307 = vector.extract_strided_slice %294 {offsets = [0, 64], sizes = [8, 32], strides = [1, 1]} : vector<8x128xf32> to vector<8x32xf32>
    %308 = math.tanh %307 : vector<8x32xf32>
    %309 = vector.extract_strided_slice %294 {offsets = [0, 96], sizes = [8, 32], strides = [1, 1]} : vector<8x128xf32> to vector<8x32xf32>
    %310 = arith.negf %309 : vector<8x32xf32>
    %311 = math.exp %310 : vector<8x32xf32>
    %cst_74 = arith.constant 1.000000e+00 : f32
    %312 = vector.broadcast %cst_74 : f32 to vector<8x32xf32>
    %313 = arith.addf %312, %311 : vector<8x32xf32>
    %314 = arith.divf %312, %313 : vector<8x32xf32>
    %315 = arith.mulf %306, %255 : vector<8x32xf32>
    %316 = arith.mulf %300, %308 : vector<8x32xf32>
    %317 = arith.addf %315, %316 : vector<8x32xf32>
    %318 = math.tanh %317 : vector<8x32xf32>
    %319 = arith.mulf %314, %318 : vector<8x32xf32>
    %c5 = arith.constant 5 : index
    %c0_75 = arith.constant 0 : index
    %c0_76 = arith.constant 0 : index
    %320 = vector.load %arg1[%c5, %c0_75, %c0_76] : memref<8x8x4xf32, #tpu.memory_space<vmem>>, vector<1x8x4xf32>
    %321 = vector.shape_cast %320 : vector<1x8x4xf32> to vector<8x4xf32>
    %cst_77 = arith.constant dense<0.000000e+00> : vector<8x128xf32>
    %322 = tpu.matmul %321, %0, %cst_77 {dimension_numbers = #tpu.dot_dimension_numbers<[1], [0], [0], [1], [0, 0, 1, 1], [], []>} : vector<8x4xf32>, vector<4x128xf32>, vector<8x128xf32> -> vector<8x128xf32>
    %cst_78 = arith.constant dense<0.000000e+00> : vector<8x128xf32>
    %323 = tpu.matmul %289, %1, %cst_78 {dimension_numbers = #tpu.dot_dimension_numbers<[1], [0], [0], [1], [0, 0, 1, 1], [], []>} : vector<8x32xf32>, vector<32x128xf32>, vector<8x128xf32> -> vector<8x128xf32>
    %324 = arith.addf %322, %323 : vector<8x128xf32>
    %325 = vector.broadcast %2 : vector<1x128xf32> to vector<8x128xf32>
    %326 = arith.addf %324, %325 : vector<8x128xf32>
    %327 = vector.extract_strided_slice %326 {offsets = [0, 0], sizes = [8, 32], strides = [1, 1]} : vector<8x128xf32> to vector<8x32xf32>
    %328 = arith.negf %327 : vector<8x32xf32>
    %329 = math.exp %328 : vector<8x32xf32>
    %cst_79 = arith.constant 1.000000e+00 : f32
    %330 = vector.broadcast %cst_79 : f32 to vector<8x32xf32>
    %331 = arith.addf %330, %329 : vector<8x32xf32>
    %332 = arith.divf %330, %331 : vector<8x32xf32>
    %333 = vector.extract_strided_slice %326 {offsets = [0, 32], sizes = [8, 32], strides = [1, 1]} : vector<8x128xf32> to vector<8x32xf32>
    %334 = arith.negf %333 : vector<8x32xf32>
    %335 = math.exp %334 : vector<8x32xf32>
    %cst_80 = arith.constant 1.000000e+00 : f32
    %336 = vector.broadcast %cst_80 : f32 to vector<8x32xf32>
    %337 = arith.addf %336, %335 : vector<8x32xf32>
    %338 = arith.divf %336, %337 : vector<8x32xf32>
    %339 = vector.extract_strided_slice %326 {offsets = [0, 64], sizes = [8, 32], strides = [1, 1]} : vector<8x128xf32> to vector<8x32xf32>
    %340 = math.tanh %339 : vector<8x32xf32>
    %341 = vector.extract_strided_slice %326 {offsets = [0, 96], sizes = [8, 32], strides = [1, 1]} : vector<8x128xf32> to vector<8x32xf32>
    %342 = arith.negf %341 : vector<8x32xf32>
    %343 = math.exp %342 : vector<8x32xf32>
    %cst_81 = arith.constant 1.000000e+00 : f32
    %344 = vector.broadcast %cst_81 : f32 to vector<8x32xf32>
    %345 = arith.addf %344, %343 : vector<8x32xf32>
    %346 = arith.divf %344, %345 : vector<8x32xf32>
    %347 = arith.mulf %338, %287 : vector<8x32xf32>
    %348 = arith.mulf %332, %340 : vector<8x32xf32>
    %349 = arith.addf %347, %348 : vector<8x32xf32>
    %350 = math.tanh %349 : vector<8x32xf32>
    %351 = arith.mulf %346, %350 : vector<8x32xf32>
    %cst_82 = arith.constant dense<0.000000e+00> : vector<8x128xf32>
    %352 = tpu.matmul %351, %3, %cst_82 {dimension_numbers = #tpu.dot_dimension_numbers<[1], [0], [0], [1], [0, 0, 1, 1], [], []>} : vector<8x32xf32>, vector<32x128xf32>, vector<8x128xf32> -> vector<8x128xf32>
    %cst_83 = arith.constant dense<0.000000e+00> : vector<8x128xf32>
    %353 = tpu.matmul %319, %4, %cst_83 {dimension_numbers = #tpu.dot_dimension_numbers<[1], [0], [0], [1], [0, 0, 1, 1], [], []>} : vector<8x32xf32>, vector<32x128xf32>, vector<8x128xf32> -> vector<8x128xf32>
    %354 = arith.addf %352, %353 : vector<8x128xf32>
    %355 = vector.broadcast %5 : vector<1x128xf32> to vector<8x128xf32>
    %356 = arith.addf %354, %355 : vector<8x128xf32>
    %357 = vector.extract_strided_slice %356 {offsets = [0, 0], sizes = [8, 32], strides = [1, 1]} : vector<8x128xf32> to vector<8x32xf32>
    %358 = arith.negf %357 : vector<8x32xf32>
    %359 = math.exp %358 : vector<8x32xf32>
    %cst_84 = arith.constant 1.000000e+00 : f32
    %360 = vector.broadcast %cst_84 : f32 to vector<8x32xf32>
    %361 = arith.addf %360, %359 : vector<8x32xf32>
    %362 = arith.divf %360, %361 : vector<8x32xf32>
    %363 = vector.extract_strided_slice %356 {offsets = [0, 32], sizes = [8, 32], strides = [1, 1]} : vector<8x128xf32> to vector<8x32xf32>
    %364 = arith.negf %363 : vector<8x32xf32>
    %365 = math.exp %364 : vector<8x32xf32>
    %cst_85 = arith.constant 1.000000e+00 : f32
    %366 = vector.broadcast %cst_85 : f32 to vector<8x32xf32>
    %367 = arith.addf %366, %365 : vector<8x32xf32>
    %368 = arith.divf %366, %367 : vector<8x32xf32>
    %369 = vector.extract_strided_slice %356 {offsets = [0, 64], sizes = [8, 32], strides = [1, 1]} : vector<8x128xf32> to vector<8x32xf32>
    %370 = math.tanh %369 : vector<8x32xf32>
    %371 = vector.extract_strided_slice %356 {offsets = [0, 96], sizes = [8, 32], strides = [1, 1]} : vector<8x128xf32> to vector<8x32xf32>
    %372 = arith.negf %371 : vector<8x32xf32>
    %373 = math.exp %372 : vector<8x32xf32>
    %cst_86 = arith.constant 1.000000e+00 : f32
    %374 = vector.broadcast %cst_86 : f32 to vector<8x32xf32>
    %375 = arith.addf %374, %373 : vector<8x32xf32>
    %376 = arith.divf %374, %375 : vector<8x32xf32>
    %377 = arith.mulf %368, %317 : vector<8x32xf32>
    %378 = arith.mulf %362, %370 : vector<8x32xf32>
    %379 = arith.addf %377, %378 : vector<8x32xf32>
    %380 = math.tanh %379 : vector<8x32xf32>
    %381 = arith.mulf %376, %380 : vector<8x32xf32>
    %c6 = arith.constant 6 : index
    %c0_87 = arith.constant 0 : index
    %c0_88 = arith.constant 0 : index
    %382 = vector.load %arg1[%c6, %c0_87, %c0_88] : memref<8x8x4xf32, #tpu.memory_space<vmem>>, vector<1x8x4xf32>
    %383 = vector.shape_cast %382 : vector<1x8x4xf32> to vector<8x4xf32>
    %cst_89 = arith.constant dense<0.000000e+00> : vector<8x128xf32>
    %384 = tpu.matmul %383, %0, %cst_89 {dimension_numbers = #tpu.dot_dimension_numbers<[1], [0], [0], [1], [0, 0, 1, 1], [], []>} : vector<8x4xf32>, vector<4x128xf32>, vector<8x128xf32> -> vector<8x128xf32>
    %cst_90 = arith.constant dense<0.000000e+00> : vector<8x128xf32>
    %385 = tpu.matmul %351, %1, %cst_90 {dimension_numbers = #tpu.dot_dimension_numbers<[1], [0], [0], [1], [0, 0, 1, 1], [], []>} : vector<8x32xf32>, vector<32x128xf32>, vector<8x128xf32> -> vector<8x128xf32>
    %386 = arith.addf %384, %385 : vector<8x128xf32>
    %387 = vector.broadcast %2 : vector<1x128xf32> to vector<8x128xf32>
    %388 = arith.addf %386, %387 : vector<8x128xf32>
    %389 = vector.extract_strided_slice %388 {offsets = [0, 0], sizes = [8, 32], strides = [1, 1]} : vector<8x128xf32> to vector<8x32xf32>
    %390 = arith.negf %389 : vector<8x32xf32>
    %391 = math.exp %390 : vector<8x32xf32>
    %cst_91 = arith.constant 1.000000e+00 : f32
    %392 = vector.broadcast %cst_91 : f32 to vector<8x32xf32>
    %393 = arith.addf %392, %391 : vector<8x32xf32>
    %394 = arith.divf %392, %393 : vector<8x32xf32>
    %395 = vector.extract_strided_slice %388 {offsets = [0, 32], sizes = [8, 32], strides = [1, 1]} : vector<8x128xf32> to vector<8x32xf32>
    %396 = arith.negf %395 : vector<8x32xf32>
    %397 = math.exp %396 : vector<8x32xf32>
    %cst_92 = arith.constant 1.000000e+00 : f32
    %398 = vector.broadcast %cst_92 : f32 to vector<8x32xf32>
    %399 = arith.addf %398, %397 : vector<8x32xf32>
    %400 = arith.divf %398, %399 : vector<8x32xf32>
    %401 = vector.extract_strided_slice %388 {offsets = [0, 64], sizes = [8, 32], strides = [1, 1]} : vector<8x128xf32> to vector<8x32xf32>
    %402 = math.tanh %401 : vector<8x32xf32>
    %403 = vector.extract_strided_slice %388 {offsets = [0, 96], sizes = [8, 32], strides = [1, 1]} : vector<8x128xf32> to vector<8x32xf32>
    %404 = arith.negf %403 : vector<8x32xf32>
    %405 = math.exp %404 : vector<8x32xf32>
    %cst_93 = arith.constant 1.000000e+00 : f32
    %406 = vector.broadcast %cst_93 : f32 to vector<8x32xf32>
    %407 = arith.addf %406, %405 : vector<8x32xf32>
    %408 = arith.divf %406, %407 : vector<8x32xf32>
    %409 = arith.mulf %400, %349 : vector<8x32xf32>
    %410 = arith.mulf %394, %402 : vector<8x32xf32>
    %411 = arith.addf %409, %410 : vector<8x32xf32>
    %412 = math.tanh %411 : vector<8x32xf32>
    %413 = arith.mulf %408, %412 : vector<8x32xf32>
    %cst_94 = arith.constant dense<0.000000e+00> : vector<8x128xf32>
    %414 = tpu.matmul %413, %3, %cst_94 {dimension_numbers = #tpu.dot_dimension_numbers<[1], [0], [0], [1], [0, 0, 1, 1], [], []>} : vector<8x32xf32>, vector<32x128xf32>, vector<8x128xf32> -> vector<8x128xf32>
    %cst_95 = arith.constant dense<0.000000e+00> : vector<8x128xf32>
    %415 = tpu.matmul %381, %4, %cst_95 {dimension_numbers = #tpu.dot_dimension_numbers<[1], [0], [0], [1], [0, 0, 1, 1], [], []>} : vector<8x32xf32>, vector<32x128xf32>, vector<8x128xf32> -> vector<8x128xf32>
    %416 = arith.addf %414, %415 : vector<8x128xf32>
    %417 = vector.broadcast %5 : vector<1x128xf32> to vector<8x128xf32>
    %418 = arith.addf %416, %417 : vector<8x128xf32>
    %419 = vector.extract_strided_slice %418 {offsets = [0, 0], sizes = [8, 32], strides = [1, 1]} : vector<8x128xf32> to vector<8x32xf32>
    %420 = arith.negf %419 : vector<8x32xf32>
    %421 = math.exp %420 : vector<8x32xf32>
    %cst_96 = arith.constant 1.000000e+00 : f32
    %422 = vector.broadcast %cst_96 : f32 to vector<8x32xf32>
    %423 = arith.addf %422, %421 : vector<8x32xf32>
    %424 = arith.divf %422, %423 : vector<8x32xf32>
    %425 = vector.extract_strided_slice %418 {offsets = [0, 32], sizes = [8, 32], strides = [1, 1]} : vector<8x128xf32> to vector<8x32xf32>
    %426 = arith.negf %425 : vector<8x32xf32>
    %427 = math.exp %426 : vector<8x32xf32>
    %cst_97 = arith.constant 1.000000e+00 : f32
    %428 = vector.broadcast %cst_97 : f32 to vector<8x32xf32>
    %429 = arith.addf %428, %427 : vector<8x32xf32>
    %430 = arith.divf %428, %429 : vector<8x32xf32>
    %431 = vector.extract_strided_slice %418 {offsets = [0, 64], sizes = [8, 32], strides = [1, 1]} : vector<8x128xf32> to vector<8x32xf32>
    %432 = math.tanh %431 : vector<8x32xf32>
    %433 = vector.extract_strided_slice %418 {offsets = [0, 96], sizes = [8, 32], strides = [1, 1]} : vector<8x128xf32> to vector<8x32xf32>
    %434 = arith.negf %433 : vector<8x32xf32>
    %435 = math.exp %434 : vector<8x32xf32>
    %cst_98 = arith.constant 1.000000e+00 : f32
    %436 = vector.broadcast %cst_98 : f32 to vector<8x32xf32>
    %437 = arith.addf %436, %435 : vector<8x32xf32>
    %438 = arith.divf %436, %437 : vector<8x32xf32>
    %439 = arith.mulf %430, %379 : vector<8x32xf32>
    %440 = arith.mulf %424, %432 : vector<8x32xf32>
    %441 = arith.addf %439, %440 : vector<8x32xf32>
    %442 = math.tanh %441 : vector<8x32xf32>
    %443 = arith.mulf %438, %442 : vector<8x32xf32>
    %c7 = arith.constant 7 : index
    %c0_99 = arith.constant 0 : index
    %c0_100 = arith.constant 0 : index
    %444 = vector.load %arg1[%c7, %c0_99, %c0_100] : memref<8x8x4xf32, #tpu.memory_space<vmem>>, vector<1x8x4xf32>
    %445 = vector.shape_cast %444 : vector<1x8x4xf32> to vector<8x4xf32>
    %cst_101 = arith.constant dense<0.000000e+00> : vector<8x128xf32>
    %446 = tpu.matmul %445, %0, %cst_101 {dimension_numbers = #tpu.dot_dimension_numbers<[1], [0], [0], [1], [0, 0, 1, 1], [], []>} : vector<8x4xf32>, vector<4x128xf32>, vector<8x128xf32> -> vector<8x128xf32>
    %cst_102 = arith.constant dense<0.000000e+00> : vector<8x128xf32>
    %447 = tpu.matmul %413, %1, %cst_102 {dimension_numbers = #tpu.dot_dimension_numbers<[1], [0], [0], [1], [0, 0, 1, 1], [], []>} : vector<8x32xf32>, vector<32x128xf32>, vector<8x128xf32> -> vector<8x128xf32>
    %448 = arith.addf %446, %447 : vector<8x128xf32>
    %449 = vector.broadcast %2 : vector<1x128xf32> to vector<8x128xf32>
    %450 = arith.addf %448, %449 : vector<8x128xf32>
    %451 = vector.extract_strided_slice %450 {offsets = [0, 0], sizes = [8, 32], strides = [1, 1]} : vector<8x128xf32> to vector<8x32xf32>
    %452 = arith.negf %451 : vector<8x32xf32>
    %453 = math.exp %452 : vector<8x32xf32>
    %cst_103 = arith.constant 1.000000e+00 : f32
    %454 = vector.broadcast %cst_103 : f32 to vector<8x32xf32>
    %455 = arith.addf %454, %453 : vector<8x32xf32>
    %456 = arith.divf %454, %455 : vector<8x32xf32>
    %457 = vector.extract_strided_slice %450 {offsets = [0, 32], sizes = [8, 32], strides = [1, 1]} : vector<8x128xf32> to vector<8x32xf32>
    %458 = arith.negf %457 : vector<8x32xf32>
    %459 = math.exp %458 : vector<8x32xf32>
    %cst_104 = arith.constant 1.000000e+00 : f32
    %460 = vector.broadcast %cst_104 : f32 to vector<8x32xf32>
    %461 = arith.addf %460, %459 : vector<8x32xf32>
    %462 = arith.divf %460, %461 : vector<8x32xf32>
    %463 = vector.extract_strided_slice %450 {offsets = [0, 64], sizes = [8, 32], strides = [1, 1]} : vector<8x128xf32> to vector<8x32xf32>
    %464 = math.tanh %463 : vector<8x32xf32>
    %465 = vector.extract_strided_slice %450 {offsets = [0, 96], sizes = [8, 32], strides = [1, 1]} : vector<8x128xf32> to vector<8x32xf32>
    %466 = arith.negf %465 : vector<8x32xf32>
    %467 = math.exp %466 : vector<8x32xf32>
    %cst_105 = arith.constant 1.000000e+00 : f32
    %468 = vector.broadcast %cst_105 : f32 to vector<8x32xf32>
    %469 = arith.addf %468, %467 : vector<8x32xf32>
    %470 = arith.divf %468, %469 : vector<8x32xf32>
    %471 = arith.mulf %462, %411 : vector<8x32xf32>
    %472 = arith.mulf %456, %464 : vector<8x32xf32>
    %473 = arith.addf %471, %472 : vector<8x32xf32>
    %474 = math.tanh %473 : vector<8x32xf32>
    %475 = arith.mulf %470, %474 : vector<8x32xf32>
    %cst_106 = arith.constant dense<0.000000e+00> : vector<8x128xf32>
    %476 = tpu.matmul %475, %3, %cst_106 {dimension_numbers = #tpu.dot_dimension_numbers<[1], [0], [0], [1], [0, 0, 1, 1], [], []>} : vector<8x32xf32>, vector<32x128xf32>, vector<8x128xf32> -> vector<8x128xf32>
    %cst_107 = arith.constant dense<0.000000e+00> : vector<8x128xf32>
    %477 = tpu.matmul %443, %4, %cst_107 {dimension_numbers = #tpu.dot_dimension_numbers<[1], [0], [0], [1], [0, 0, 1, 1], [], []>} : vector<8x32xf32>, vector<32x128xf32>, vector<8x128xf32> -> vector<8x128xf32>
    %478 = arith.addf %476, %477 : vector<8x128xf32>
    %479 = vector.broadcast %5 : vector<1x128xf32> to vector<8x128xf32>
    %480 = arith.addf %478, %479 : vector<8x128xf32>
    %481 = vector.extract_strided_slice %480 {offsets = [0, 0], sizes = [8, 32], strides = [1, 1]} : vector<8x128xf32> to vector<8x32xf32>
    %482 = arith.negf %481 : vector<8x32xf32>
    %483 = math.exp %482 : vector<8x32xf32>
    %cst_108 = arith.constant 1.000000e+00 : f32
    %484 = vector.broadcast %cst_108 : f32 to vector<8x32xf32>
    %485 = arith.addf %484, %483 : vector<8x32xf32>
    %486 = arith.divf %484, %485 : vector<8x32xf32>
    %487 = vector.extract_strided_slice %480 {offsets = [0, 32], sizes = [8, 32], strides = [1, 1]} : vector<8x128xf32> to vector<8x32xf32>
    %488 = arith.negf %487 : vector<8x32xf32>
    %489 = math.exp %488 : vector<8x32xf32>
    %cst_109 = arith.constant 1.000000e+00 : f32
    %490 = vector.broadcast %cst_109 : f32 to vector<8x32xf32>
    %491 = arith.addf %490, %489 : vector<8x32xf32>
    %492 = arith.divf %490, %491 : vector<8x32xf32>
    %493 = vector.extract_strided_slice %480 {offsets = [0, 64], sizes = [8, 32], strides = [1, 1]} : vector<8x128xf32> to vector<8x32xf32>
    %494 = math.tanh %493 : vector<8x32xf32>
    %495 = vector.extract_strided_slice %480 {offsets = [0, 96], sizes = [8, 32], strides = [1, 1]} : vector<8x128xf32> to vector<8x32xf32>
    %496 = arith.negf %495 : vector<8x32xf32>
    %497 = math.exp %496 : vector<8x32xf32>
    %cst_110 = arith.constant 1.000000e+00 : f32
    %498 = vector.broadcast %cst_110 : f32 to vector<8x32xf32>
    %499 = arith.addf %498, %497 : vector<8x32xf32>
    %500 = arith.divf %498, %499 : vector<8x32xf32>
    %501 = arith.mulf %492, %441 : vector<8x32xf32>
    %502 = arith.mulf %486, %494 : vector<8x32xf32>
    %503 = arith.addf %501, %502 : vector<8x32xf32>
    %504 = math.tanh %503 : vector<8x32xf32>
    %505 = arith.mulf %500, %504 : vector<8x32xf32>
    %c0_111 = arith.constant 0 : index
    %c0_112 = arith.constant 0 : index
    %506 = vector.load %arg8[%c0_111, %c0_112] : memref<32x128xf32, #tpu.memory_space<vmem>>, vector<32x128xf32>
    %cst_113 = arith.constant dense<0.000000e+00> : vector<8x128xf32>
    %507 = tpu.matmul %505, %506, %cst_113 {dimension_numbers = #tpu.dot_dimension_numbers<[1], [0], [0], [1], [0, 0, 1, 1], [], []>} : vector<8x32xf32>, vector<32x128xf32>, vector<8x128xf32> -> vector<8x128xf32>
    %c0_114 = arith.constant 0 : index
    %c0_115 = arith.constant 0 : index
    %508 = vector.load %arg9[%c0_114, %c0_115] : memref<1x128xf32, #tpu.memory_space<vmem>>, vector<1x128xf32>
    %509 = vector.broadcast %508 : vector<1x128xf32> to vector<8x128xf32>
    %510 = arith.addf %507, %509 : vector<8x128xf32>
    %c0_116 = arith.constant 0 : index
    %c0_117 = arith.constant 0 : index
    %511 = vector.load %arg10[%c0_116, %c0_117] : memref<8x128xf32, #tpu.memory_space<vmem>>, vector<8x128xf32>
    tpu.vector_store %arg10[%c0_116, %c0_117], %510 {strides = array<i32>} : memref<8x128xf32, #tpu.memory_space<vmem>>, vector<8x128xf32>,
    return
  }
  func.func @transform_0(%arg0: i32) -> (i32, i32, i32) {
    %c0_i32 = arith.constant 0 : i32
    %c0_i32_0 = arith.constant 0 : i32
    %c0_i32_1 = arith.constant 0 : i32
    return %c0_i32, %arg0, %c0_i32_0 : i32, i32, i32
  }
  func.func @transform_1(%arg0: i32) -> (i32, i32) {
    %c0_i32 = arith.constant 0 : i32
    %c0_i32_0 = arith.constant 0 : i32
    %c0_i32_1 = arith.constant 0 : i32
    return %c0_i32, %c0_i32_0 : i32, i32
  }
  func.func @transform_2(%arg0: i32) -> (i32, i32) {
    %c0_i32 = arith.constant 0 : i32
    %c0_i32_0 = arith.constant 0 : i32
    %c0_i32_1 = arith.constant 0 : i32
    return %c0_i32, %c0_i32_0 : i32, i32
  }
  func.func @transform_3(%arg0: i32) -> (i32, i32) {
    %c0_i32 = arith.constant 0 : i32
    %c0_i32_0 = arith.constant 0 : i32
    %c0_i32_1 = arith.constant 0 : i32
    return %c0_i32, %c0_i32_0 : i32, i32
  }
  func.func @transform_4(%arg0: i32) -> (i32, i32) {
    %c0_i32 = arith.constant 0 : i32
    %c0_i32_0 = arith.constant 0 : i32
    %c0_i32_1 = arith.constant 0 : i32
    return %c0_i32, %c0_i32_0 : i32, i32
  }
  func.func @transform_5(%arg0: i32) -> (i32, i32) {
    %c0_i32 = arith.constant 0 : i32
    %c0_i32_0 = arith.constant 0 : i32
    %c0_i32_1 = arith.constant 0 : i32
    return %c0_i32, %c0_i32_0 : i32, i32
  }
  func.func @transform_6(%arg0: i32) -> (i32, i32) {
    %c0_i32 = arith.constant 0 : i32
    %c0_i32_0 = arith.constant 0 : i32
    %c0_i32_1 = arith.constant 0 : i32
    return %c0_i32, %c0_i32_0 : i32, i32
  }
  func.func @transform_7(%arg0: i32) -> (i32, i32) {
    %c0_i32 = arith.constant 0 : i32
    %c0_i32_0 = arith.constant 0 : i32
    %c0_i32_1 = arith.constant 0 : i32
    return %c0_i32, %c0_i32_0 : i32, i32
  }
  func.func @transform_8(%arg0: i32) -> (i32, i32) {
    %c0_i32 = arith.constant 0 : i32
    %c0_i32_0 = arith.constant 0 : i32
    %c0_i32_1 = arith.constant 0 : i32
    return %c0_i32, %c0_i32_0 : i32, i32
  }
  func.func @transform_9(%arg0: i32) -> (i32, i32) {
    %c0_i32 = arith.constant 0 : i32
    %c0_i32_0 = arith.constant 0 : i32
    return %arg0, %c0_i32 : i32, i32
  }
}

</mosaic_0001>

<llo_original>
// kernel: tpu_custom_call.1
$region0: #{tpu_custom_call.1}
  #allocation0 [shape = 'u32[]', space=smem, size = 0x4, offset = 0x4, fixed_abs, tag = 'smem constant byte address 0x4 - core index']
  #allocation1 [shape = 'u32[72,128]{1,0:T(1,128)}', space=vmem, size = 0x9000, scoped, tag = 'internal scratch']
  %s0 = inlined_call_operand.vmem [shape: f32[8,8,4], index: 0, kind: input, shape index: {}]
  %s1 = inlined_call_operand.hbm [shape: f32[4,128], index: 1, kind: input, shape index: {}]
  %s2 = inlined_call_operand.vmem [shape: f32[32,128], index: 2, kind: input, shape index: {}]
  %s3 = inlined_call_operand.vmem [shape: f32[1,128], index: 3, kind: input, shape index: {}]
  %s4 = inlined_call_operand.vmem [shape: f32[32,128], index: 4, kind: input, shape index: {}]
  %s5 = inlined_call_operand.vmem [shape: f32[32,128], index: 5, kind: input, shape index: {}]
  %s6 = inlined_call_operand.vmem [shape: f32[1,128], index: 6, kind: input, shape index: {}]
  %s7 = inlined_call_operand.hbm [shape: f32[32,128], index: 7, kind: input, shape index: {}]
  %s8 = inlined_call_operand.vmem [shape: f32[1,128], index: 8, kind: input, shape index: {}]
  %s9 = inlined_call_operand.hbm [shape: f32[8,128], index: 9, kind: output, shape index: {}]
  %s10 = sld [smem:[#allocation0]]
  $region54: #{tpu_custom_call.1} parent=0
    _
  %s12 = ssub.s32 1, %s10
  %s13 = scalar_select 0, %s12, %s10
  $region1: #{tpu_custom_call.1} parent=0
    #allocation2 [shape = 'u8[2048]{0}', space=vmem, size = 0x800, scoped, tag = 'input window, operand 1, single buffered']
    #allocation3 [shape = 's32[1]{0}', space=sflag, size = 0x4, scoped, tag = 'scoped memory for tpu_custom_call.1']
    #allocation4 [shape = 's32[1]{0}', space=sflag, size = 0x4, scoped, tag = 'scoped memory for tpu_custom_call.1']
    #allocation5 [shape = 'u8[16384]{0}', space=vmem, size = 0x4000, scoped, tag = 'input window, operand 7, single buffered']
    #allocation6 [shape = 's32[1]{0}', space=sflag, size = 0x4, scoped, tag = 'scoped memory for tpu_custom_call.1']
    #allocation7 [shape = 'u8[4096]{0}', space=vmem, size = 0x1000, scoped, tag = 'output window, operand 0, single buffered']
    %14 = vsyncpa [#allocation3], 0
    %15 = vsyncpa [#allocation6], 0
    %16 = vsyncpa [#allocation4], 0
    // Predicated region
    $region2: #{tpu_custom_call.1} parent=1 // pred_check
      _
    $region3: #{tpu_custom_call.1} parent=1 // pred_check_branch
      %18 = sbr.rel (0) target = $region5
    $region4: #{tpu_custom_call.1} parent=1 // pred_region
      _
    $region5: #{tpu_custom_call.1} parent=1 // pred_fallthru
      _
    // Predicated region
    $region6: #{tpu_custom_call.1} parent=1 // pred_check
      _
    $region7: #{tpu_custom_call.1} parent=1 // pred_check_branch
      %20 = sbr.rel (0) target = $region9
    $region8: #{tpu_custom_call.1} parent=1 // pred_region
      %22 = vsyncadd [#allocation3], 0
      %s24 = sshll.u32 %s1, 4
      %s25 = int_to_ptr.hbm [resolvable:$true] %s24
      %s26 = sshll.u32 [#allocation2], 4
      %s27 = int_to_ptr.vmem [resolvable:$true] %s26
      %29 = dma.hbm_to_vmem [thread:$0]  %s25, 64, %s27, [#allocation3]
    $region9: #{tpu_custom_call.1} parent=1 // pred_fallthru
      _
    // Predicated region
    $region10: #{tpu_custom_call.1} parent=1 // pred_check
      _
    $region11: #{tpu_custom_call.1} parent=1 // pred_check_branch
      %31 = sbr.rel (0) target = $region13
    $region12: #{tpu_custom_call.1} parent=1 // pred_region
      _
    $region13: #{tpu_custom_call.1} parent=1 // pred_fallthru
      _
    // Predicated region
    $region14: #{tpu_custom_call.1} parent=1 // pred_check
      _
    $region15: #{tpu_custom_call.1} parent=1 // pred_check_branch
      %33 = sbr.rel (0) target = $region17
    $region16: #{tpu_custom_call.1} parent=1 // pred_region
      _
    $region17: #{tpu_custom_call.1} parent=1 // pred_fallthru
      _
    // Predicated region
    $region18: #{tpu_custom_call.1} parent=1 // pred_check
      _
    $region19: #{tpu_custom_call.1} parent=1 // pred_check_branch
      %35 = sbr.rel (0) target = $region21
    $region20: #{tpu_custom_call.1} parent=1 // pred_region
      _
    $region21: #{tpu_custom_call.1} parent=1 // pred_fallthru
      _
    // Predicated region
    $region22: #{tpu_custom_call.1} parent=1 // pred_check
      _
    $region23: #{tpu_custom_call.1} parent=1 // pred_check_branch
      %37 = sbr.rel (0) target = $region25
    $region24: #{tpu_custom_call.1} parent=1 // pred_region
      _
    $region25: #{tpu_custom_call.1} parent=1 // pred_fallthru
      _
    // Predicated region
    $region26: #{tpu_custom_call.1} parent=1 // pred_check
      _
    $region27: #{tpu_custom_call.1} parent=1 // pred_check_branch
      %39 = sbr.rel (0) target = $region29
    $region28: #{tpu_custom_call.1} parent=1 // pred_region
      _
    $region29: #{tpu_custom_call.1} parent=1 // pred_fallthru
      _
    // Predicated region
    $region30: #{tpu_custom_call.1} parent=1 // pred_check
      _
    $region31: #{tpu_custom_call.1} parent=1 // pred_check_branch
      %41 = sbr.rel (0) target = $region33
    $region32: #{tpu_custom_call.1} parent=1 // pred_region
      %43 = vsyncadd [#allocation6], 0
      %s44 = sshll.u32 %s7, 4
      %s45 = int_to_ptr.hbm [resolvable:$true] %s44
      %s46 = sshll.u32 [#allocation5], 4
      %s47 = int_to_ptr.vmem [resolvable:$true] %s46
      %52 = dma.hbm_to_vmem [thread:$0]  %s45, 512, %s47, [#allocation6], 128, 128, 8
    $region33: #{tpu_custom_call.1} parent=1 // pred_fallthru
      _
    // Predicated region
    $region34: #{tpu_custom_call.1} parent=1 // pred_check
      _
    $region35: #{tpu_custom_call.1} parent=1 // pred_check_branch
      %54 = sbr.rel (0) target = $region37
    $region36: #{tpu_custom_call.1} parent=1 // pred_region
      _
    $region37: #{tpu_custom_call.1} parent=1 // pred_fallthru
      _
    // Predicated region
    $region38: #{tpu_custom_call.1} parent=1 // pred_check
      _
    $region39: #{tpu_custom_call.1} parent=1 // pred_check_branch
      %56 = sbr.rel (0) target = $region41
    $region40: #{tpu_custom_call.1} parent=1 // pred_region
      %58 = dma.done [#allocation3], 64
    $region41: #{tpu_custom_call.1} parent=1 // pred_fallthru
      _
    // Predicated region
    $region42: #{tpu_custom_call.1} parent=1 // pred_check
      _
    $region43: #{tpu_custom_call.1} parent=1 // pred_check_branch
      %60 = sbr.rel (0) target = $region45
    $region44: #{tpu_custom_call.1} parent=1 // pred_region
      %62 = dma.done [#allocation6], 512
    $region45: #{tpu_custom_call.1} parent=1 // pred_fallthru
      _
    %v63 = vld [vmem:[#allocation2] sm:$0xf]
    %v64 = vld [vmem:[%s2] sm:$0xff]
    %v65 = vld [vmem:[%s2 + $0x8] sm:$0xff]
    %v66 = vld [vmem:[%s2 + $0x10] sm:$0xff]
    %v67 = vld [vmem:[%s2 + $0x18] sm:$0xff]
    %v68 = vld [vmem:[%s3] sm:$0x1]
    %v69 = vld [vmem:[%s4] sm:$0xff]
    %v70 = vld [vmem:[%s4 + $0x8] sm:$0xff]
    %v71 = vld [vmem:[%s4 + $0x10] sm:$0xff]
    %v72 = vld [vmem:[%s4 + $0x18] sm:$0xff]
    %v73 = vld [vmem:[%s5] sm:$0xff]
    %v74 = vld [vmem:[%s5 + $0x8] sm:$0xff]
    %v75 = vld [vmem:[%s5 + $0x10] sm:$0xff]
    %v76 = vld [vmem:[%s5 + $0x18] sm:$0xff]
    %v77 = vld [vmem:[%s6] sm:$0x1]
    %v78 = vld [vmem:[%s0] sm:$0xff]
    %vm79 = vcmask 261120
    %v81 = vsel %vm79, 0.0, 0
    %83 = vmatpush.msra.mxu0 0.0
    %84 = vmatpush.msra.mxu0 0.0
    %85 = vmatpush.msra.mxu0 0.0
    %86 = vmatpush.msra.mxu0 0.0
    %87 = vmatpush.msra.mxu0 0.0
    %88 = vmatpush.msra.mxu0 0.0
    %89 = vmatpush.msra.mxu0 0.0
    %90 = vmatpush.msra.mxu0 0.0
    %91 = vmatpush.msra.mxu0 0.0
    %92 = vmatpush.msra.mxu0 0.0
    %93 = vmatpush.msra.mxu0 0.0
    %94 = vmatpush.msra.mxu0 0.0
    %95 = vmatpush.msra.mxu0 %v67
    %96 = vmatpush.msra.mxu0 %v66
    %97 = vmatpush.msra.mxu0 %v65
    %98 = vmatpush.msra.mxu0 %v64
    %99 = vmatmul.f32.gmra.mxu0 %v81
    %v100 = vpop.f32.mrf.mxu0
    %v101 = vadd.f32 0.0, %v100
    %102 = vdwg.mxu0
    %vm103 = vcmask 31744
    %v105 = vsel %vm103, %v78, 0
    %vm107 = vcmask 1043456
    %v109 = vsel %vm107, %v63, 0
    %111 = vmatpush.msra.mxu0 0.0
    %112 = vmatpush.msra.mxu0 0.0
    %113 = vmatpush.msra.mxu0 0.0
    %114 = vmatpush.msra.mxu0 0.0
    %115 = vmatpush.msra.mxu0 0.0
    %116 = vmatpush.msra.mxu0 0.0
    %117 = vmatpush.msra.mxu0 0.0
    %118 = vmatpush.msra.mxu0 0.0
    %119 = vmatpush.msra.mxu0 0.0
    %120 = vmatpush.msra.mxu0 0.0
    %121 = vmatpush.msra.mxu0 0.0
    %122 = vmatpush.msra.mxu0 0.0
    %123 = vmatpush.msra.mxu0 0.0
    %124 = vmatpush.msra.mxu0 0.0
    %125 = vmatpush.msra.mxu0 0.0
    %126 = vmatpush.msra.mxu0 %v109
    %127 = vmatmul.f32.gmra.mxu0 %v105
    %v128 = vpop.f32.mrf.mxu0
    %v129 = vadd.f32 %v101, %v128
    %130 = vdwg.mxu0
    %v132 = vperm.slane %v68, 0
    %v134 = vadd.f32 %v129, %v132
    %v135 = vxor.u32 %v134, 2147483648
    %v136 = vmul.f32 %v135, 1.442695
    %v137 = vpow.pop %v136
    %v138 = vadd.f32 %v137, 1.0
    %v139 = vrcp.pop %v138
    %v140 = vmul.f32 %v138, %v139
    %v141 = vsub.f32 1.0, %v140
    %v142 = vmul.f32 %v139, %v141
    %v143 = vadd.f32 %v139, %v142
    %vm144 = vweird.f32 %v138
    %vm145 = vweird.f32 %v139
    %vm146 = vmor %vm144, %vm145
    %v147 = vsel %vm146, %v139, %v143
    %v148 = vand.u32 2147483647, %v138
    %vm149 = vcmp.eq.f32.partialorder %v148, 8.507059e+37
    %v150 = vand.u32 %v138, 2147483648
    %v151 = vor.u32 1.1754944e-38, %v150
    %v152 = vsel %vm149, %v151, %v147
    %v153 = vmul.f32 1.0, %v152
    %v154 = vtanh.pop %v134
    %v155 = vmul.f32 %v153, 0.0
    %157 = vrot.lane.b32.xlu0 %v154, 64
    %v158 = vpop.permute.xlu0 %157
    %v160 = vmul.f32 %v153, %v158
    %162 = vrot.lane.b32.xlu0 %v160, 32
    %v163 = vpop.permute.xlu0 %162
    %v165 = vadd.f32 %v155, %v163
    %v166 = vtanh.pop %v165
    %168 = vrot.lane.b32.xlu0 %v166, 64
    %v169 = vpop.permute.xlu0 %168
    %v171 = vmul.f32 %v153, %v169
    %172 = vmatpush.msra.mxu0 0.0
    %173 = vmatpush.msra.mxu0 0.0
    %174 = vmatpush.msra.mxu0 0.0
    %175 = vmatpush.msra.mxu0 0.0
    %176 = vmatpush.msra.mxu0 0.0
    %177 = vmatpush.msra.mxu0 0.0
    %178 = vmatpush.msra.mxu0 0.0
    %179 = vmatpush.msra.mxu0 0.0
    %180 = vmatpush.msra.mxu0 0.0
    %181 = vmatpush.msra.mxu0 0.0
    %182 = vmatpush.msra.mxu0 0.0
    %183 = vmatpush.msra.mxu0 0.0
    %184 = vmatpush.msra.mxu0 %v76
    %185 = vmatpush.msra.mxu0 %v75
    %186 = vmatpush.msra.mxu0 %v74
    %187 = vmatpush.msra.mxu0 %v73
    %188 = vmatmul.f32.gmra.mxu0 %v81
    %v189 = vpop.f32.mrf.mxu0
    %v190 = vadd.f32 0.0, %v189
    %191 = vdwg.mxu0
    %193 = vrot.lane.b32.xlu0 %v171, 32
    %v194 = vpop.permute.xlu0 %193
    %v195 = vsel %vm79, %v194, 0
    %197 = vmatpush.msra.mxu0 0.0
    %198 = vmatpush.msra.mxu0 0.0
    %199 = vmatpush.msra.mxu0 0.0
    %200 = vmatpush.msra.mxu0 0.0
    %201 = vmatpush.msra.mxu0 0.0
    %202 = vmatpush.msra.mxu0 0.0
    %203 = vmatpush.msra.mxu0 0.0
    %204 = vmatpush.msra.mxu0 0.0
    %205 = vmatpush.msra.mxu0 0.0
    %206 = vmatpush.msra.mxu0 0.0
    %207 = vmatpush.msra.mxu0 0.0
    %208 = vmatpush.msra.mxu0 0.0
    %209 = vmatpush.msra.mxu0 %v72
    %210 = vmatpush.msra.mxu0 %v71
    %211 = vmatpush.msra.mxu0 %v70
    %212 = vmatpush.msra.mxu0 %v69
    %213 = vmatmul.f32.gmra.mxu0 %v195
    %v214 = vpop.f32.mrf.mxu0
    %v215 = vadd.f32 %v190, %v214
    %216 = vdwg.mxu0
    %v218 = vperm.slane %v77, 0
    %v220 = vadd.f32 %v215, %v218
    %v221 = vxor.u32 %v220, 2147483648
    %v222 = vmul.f32 %v221, 1.442695
    %v223 = vpow.pop %v222
    %v224 = vadd.f32 %v223, 1.0
    %v225 = vrcp.pop %v224
    %v226 = vmul.f32 %v224, %v225
    %v227 = vsub.f32 1.0, %v226
    %v228 = vmul.f32 %v225, %v227
    %v229 = vadd.f32 %v225, %v228
    %vm230 = vweird.f32 %v224
    %vm231 = vweird.f32 %v225
    %vm232 = vmor %vm230, %vm231
    %v233 = vsel %vm232, %v225, %v229
    %v234 = vand.u32 2147483647, %v224
    %vm235 = vcmp.eq.f32.partialorder %v234, 8.507059e+37
    %v236 = vand.u32 %v224, 2147483648
    %v237 = vor.u32 1.1754944e-38, %v236
    %v238 = vsel %vm235, %v237, %v233
    %v239 = vmul.f32 1.0, %v238
    %v240 = vtanh.pop %v220
    %v241 = vmul.f32 %v239, 0.0
    %243 = vrot.lane.b32.xlu0 %v240, 64
    %v244 = vpop.permute.xlu0 %243
    %v246 = vmul.f32 %v239, %v244
    %248 = vrot.lane.b32.xlu0 %v246, 32
    %v249 = vpop.permute.xlu0 %248
    %v251 = vadd.f32 %v241, %v249
    %v252 = vtanh.pop %v251
    %254 = vrot.lane.b32.xlu0 %v252, 64
    %v255 = vpop.permute.xlu0 %254
    %v257 = vmul.f32 %v239, %v255
    %s258 = scalar_lea.vmem %s0, 8
    %v259 = vld [vmem:[%s258] sm:$0xff]
    %260 = vmatpush.msra.mxu0 0.0
    %261 = vmatpush.msra.mxu0 0.0
    %262 = vmatpush.msra.mxu0 0.0
    %263 = vmatpush.msra.mxu0 0.0
    %264 = vmatpush.msra.mxu0 0.0
    %265 = vmatpush.msra.mxu0 0.0
    %266 = vmatpush.msra.mxu0 0.0
    %267 = vmatpush.msra.mxu0 0.0
    %268 = vmatpush.msra.mxu0 0.0
    %269 = vmatpush.msra.mxu0 0.0
    %270 = vmatpush.msra.mxu0 0.0
    %271 = vmatpush.msra.mxu0 0.0
    %272 = vmatpush.msra.mxu0 %v67
    %273 = vmatpush.msra.mxu0 %v66
    %274 = vmatpush.msra.mxu0 %v65
    %275 = vmatpush.msra.mxu0 %v64
    %276 = vmatmul.f32.gmra.mxu0 %v195
    %v277 = vpop.f32.mrf.mxu0
    %v278 = vadd.f32 0.0, %v277
    %279 = vdwg.mxu0
    %v281 = vsel %vm103, %v259, 0
    %283 = vmatpush.msra.mxu0 0.0
    %284 = vmatpush.msra.mxu0 0.0
    %285 = vmatpush.msra.mxu0 0.0
    %286 = vmatpush.msra.mxu0 0.0
    %287 = vmatpush.msra.mxu0 0.0
    %288 = vmatpush.msra.mxu0 0.0
    %289 = vmatpush.msra.mxu0 0.0
    %290 = vmatpush.msra.mxu0 0.0
    %291 = vmatpush.msra.mxu0 0.0
    %292 = vmatpush.msra.mxu0 0.0
    %293 = vmatpush.msra.mxu0 0.0
    %294 = vmatpush.msra.mxu0 0.0
    %295 = vmatpush.msra.mxu0 0.0
    %296 = vmatpush.msra.mxu0 0.0
    %297 = vmatpush.msra.mxu0 0.0
    %298 = vmatpush.msra.mxu0 %v109
    %299 = vmatmul.f32.gmra.mxu0 %v281
    %v300 = vpop.f32.mrf.mxu0
    %v301 = vadd.f32 %v278, %v300
    %302 = vdwg.mxu0
    %v303 = vadd.f32 %v301, %v132
    %v304 = vxor.u32 %v303, 2147483648
    %v305 = vmul.f32 %v304, 1.442695
    %v306 = vpow.pop %v305
    %v307 = vadd.f32 %v306, 1.0
    %v308 = vrcp.pop %v307
    %v309 = vmul.f32 %v307, %v308
    %v310 = vsub.f32 1.0, %v309
    %v311 = vmul.f32 %v308, %v310
    %v312 = vadd.f32 %v308, %v311
    %vm313 = vweird.f32 %v307
    %vm314 = vweird.f32 %v308
    %vm315 = vmor %vm313, %vm314
    %v316 = vsel %vm315, %v308, %v312
    %v317 = vand.u32 2147483647, %v307
    %vm318 = vcmp.eq.f32.partialorder %v317, 8.507059e+37
    %v319 = vand.u32 %v307, 2147483648
    %v320 = vor.u32 1.1754944e-38, %v319
    %v321 = vsel %vm318, %v320, %v316
    %v322 = vmul.f32 1.0, %v321
    %v323 = vtanh.pop %v303
    %v324 = vmul.f32 %v322, %v165
    %326 = vrot.lane.b32.xlu0 %v323, 64
    %v327 = vpop.permute.xlu0 %326
    %v329 = vmul.f32 %v322, %v327
    %331 = vrot.lane.b32.xlu0 %v329, 32
    %v332 = vpop.permute.xlu0 %331
    %v334 = vadd.f32 %v324, %v332
    %v335 = vtanh.pop %v334
    %337 = vrot.lane.b32.xlu0 %v335, 64
    %v338 = vpop.permute.xlu0 %337
    %v340 = vmul.f32 %v322, %v338
    %342 = vrot.lane.b32.xlu0 %v257, 32
    %v343 = vpop.permute.xlu0 %342
    %v344 = vsel %vm79, %v343, 0
    %346 = vmatpush.msra.mxu0 0.0
    %347 = vmatpush.msra.mxu0 0.0
    %348 = vmatpush.msra.mxu0 0.0
    %349 = vmatpush.msra.mxu0 0.0
    %350 = vmatpush.msra.mxu0 0.0
    %351 = vmatpush.msra.mxu0 0.0
    %352 = vmatpush.msra.mxu0 0.0
    %353 = vmatpush.msra.mxu0 0.0
    %354 = vmatpush.msra.mxu0 0.0
    %355 = vmatpush.msra.mxu0 0.0
    %356 = vmatpush.msra.mxu0 0.0
    %357 = vmatpush.msra.mxu0 0.0
    %358 = vmatpush.msra.mxu0 %v76
    %359 = vmatpush.msra.mxu0 %v75
    %360 = vmatpush.msra.mxu0 %v74
    %361 = vmatpush.msra.mxu0 %v73
    %362 = vmatmul.f32.gmra.mxu0 %v344
    %v363 = vpop.f32.mrf.mxu0
    %v364 = vadd.f32 0.0, %v363
    %365 = vdwg.mxu0
    %367 = vrot.lane.b32.xlu0 %v340, 32
    %v368 = vpop.permute.xlu0 %367
    %v369 = vsel %vm79, %v368, 0
    %371 = vmatpush.msra.mxu0 0.0
    %372 = vmatpush.msra.mxu0 0.0
    %373 = vmatpush.msra.mxu0 0.0
    %374 = vmatpush.msra.mxu0 0.0
    %375 = vmatpush.msra.mxu0 0.0
    %376 = vmatpush.msra.mxu0 0.0
    %377 = vmatpush.msra.mxu0 0.0
    %378 = vmatpush.msra.mxu0 0.0
    %379 = vmatpush.msra.mxu0 0.0
    %380 = vmatpush.msra.mxu0 0.0
    %381 = vmatpush.msra.mxu0 0.0
    %382 = vmatpush.msra.mxu0 0.0
    %383 = vmatpush.msra.mxu0 %v72
    %384 = vmatpush.msra.mxu0 %v71
    %385 = vmatpush.msra.mxu0 %v70
    %386 = vmatpush.msra.mxu0 %v69
    %387 = vmatmul.f32.gmra.mxu0 %v369
    %v388 = vpop.f32.mrf.mxu0
    %v389 = vadd.f32 %v364, %v388
    %390 = vdwg.mxu0
    %v391 = vadd.f32 %v389, %v218
    %v392 = vxor.u32 %v391, 2147483648
    %v393 = vmul.f32 %v392, 1.442695
    %v394 = vpow.pop %v393
    %v395 = vadd.f32 %v394, 1.0
    %v396 = vrcp.pop %v395
    %v397 = vmul.f32 %v395, %v396
    %v398 = vsub.f32 1.0, %v397
    %v399 = vmul.f32 %v396, %v398
    %v400 = vadd.f32 %v396, %v399
    %vm401 = vweird.f32 %v395
    %vm402 = vweird.f32 %v396
    %vm403 = vmor %vm401, %vm402
    %v404 = vsel %vm403, %v396, %v400
    %v405 = vand.u32 2147483647, %v395
    %vm406 = vcmp.eq.f32.partialorder %v405, 8.507059e+37
    %v407 = vand.u32 %v395, 2147483648
    %v408 = vor.u32 1.1754944e-38, %v407
    %v409 = vsel %vm406, %v408, %v404
    %v410 = vmul.f32 1.0, %v409
    %v411 = vtanh.pop %v391
    %v412 = vmul.f32 %v410, %v251
    %414 = vrot.lane.b32.xlu0 %v411, 64
    %v415 = vpop.permute.xlu0 %414
    %v417 = vmul.f32 %v410, %v415
    %419 = vrot.lane.b32.xlu0 %v417, 32
    %v420 = vpop.permute.xlu0 %419
    %v422 = vadd.f32 %v412, %v420
    %v423 = vtanh.pop %v422
    %425 = vrot.lane.b32.xlu0 %v423, 64
    %v426 = vpop.permute.xlu0 %425
    %v428 = vmul.f32 %v410, %v426
    %s429 = scalar_lea.vmem %s0, 16
    %v430 = vld [vmem:[%s429] sm:$0xff]
    %431 = vmatpush.msra.mxu0 0.0
    %432 = vmatpush.msra.mxu0 0.0
    %433 = vmatpush.msra.mxu0 0.0
    %434 = vmatpush.msra.mxu0 0.0
    %435 = vmatpush.msra.mxu0 0.0
    %436 = vmatpush.msra.mxu0 0.0
    %437 = vmatpush.msra.mxu0 0.0
    %438 = vmatpush.msra.mxu0 0.0
    %439 = vmatpush.msra.mxu0 0.0
    %440 = vmatpush.msra.mxu0 0.0
    %441 = vmatpush.msra.mxu0 0.0
    %442 = vmatpush.msra.mxu0 0.0
    %443 = vmatpush.msra.mxu0 %v67
    %444 = vmatpush.msra.mxu0 %v66
    %445 = vmatpush.msra.mxu0 %v65
    %446 = vmatpush.msra.mxu0 %v64
    %447 = vmatmul.f32.gmra.mxu0 %v369
    %v448 = vpop.f32.mrf.mxu0
    %v449 = vadd.f32 0.0, %v448
    %450 = vdwg.mxu0
    %v452 = vsel %vm103, %v430, 0
    %454 = vmatpush.msra.mxu0 0.0
    %455 = vmatpush.msra.mxu0 0.0
    %456 = vmatpush.msra.mxu0 0.0
    %457 = vmatpush.msra.mxu0 0.0
    %458 = vmatpush.msra.mxu0 0.0
    %459 = vmatpush.msra.mxu0 0.0
    %460 = vmatpush.msra.mxu0 0.0
    %461 = vmatpush.msra.mxu0 0.0
    %462 = vmatpush.msra.mxu0 0.0
    %463 = vmatpush.msra.mxu0 0.0
    %464 = vmatpush.msra.mxu0 0.0
    %465 = vmatpush.msra.mxu0 0.0
    %466 = vmatpush.msra.mxu0 0.0
    %467 = vmatpush.msra.mxu0 0.0
    %468 = vmatpush.msra.mxu0 0.0
    %469 = vmatpush.msra.mxu0 %v109
    %470 = vmatmul.f32.gmra.mxu0 %v452
    %v471 = vpop.f32.mrf.mxu0
    %v472 = vadd.f32 %v449, %v471
    %473 = vdwg.mxu0
    %v474 = vadd.f32 %v472, %v132
    %v475 = vxor.u32 %v474, 2147483648
    %v476 = vmul.f32 %v475, 1.442695
    %v477 = vpow.pop %v476
    %v478 = vadd.f32 %v477, 1.0
    %v479 = vrcp.pop %v478
    %v480 = vmul.f32 %v478, %v479
    %v481 = vsub.f32 1.0, %v480
    %v482 = vmul.f32 %v479, %v481
    %v483 = vadd.f32 %v479, %v482
    %vm484 = vweird.f32 %v478
    %vm485 = vweird.f32 %v479
    %vm486 = vmor %vm484, %vm485
    %v487 = vsel %vm486, %v479, %v483
    %v488 = vand.u32 2147483647, %v478
    %vm489 = vcmp.eq.f32.partialorder %v488, 8.507059e+37
    %v490 = vand.u32 %v478, 2147483648
    %v491 = vor.u32 1.1754944e-38, %v490
    %v492 = vsel %vm489, %v491, %v487
    %v493 = vmul.f32 1.0, %v492
    %v494 = vtanh.pop %v474
    %v495 = vmul.f32 %v493, %v334
    %497 = vrot.lane.b32.xlu0 %v494, 64
    %v498 = vpop.permute.xlu0 %497
    %v500 = vmul.f32 %v493, %v498
    %502 = vrot.lane.b32.xlu0 %v500, 32
    %v503 = vpop.permute.xlu0 %502
    %v505 = vadd.f32 %v495, %v503
    %v506 = vtanh.pop %v505
    %508 = vrot.lane.b32.xlu0 %v506, 64
    %v509 = vpop.permute.xlu0 %508
    %v511 = vmul.f32 %v493, %v509
    %513 = vrot.lane.b32.xlu0 %v428, 32
    %v514 = vpop.permute.xlu0 %513
    %v515 = vsel %vm79, %v514, 0
    %517 = vmatpush.msra.mxu0 0.0
    %518 = vmatpush.msra.mxu0 0.0
    %519 = vmatpush.msra.mxu0 0.0
    %520 = vmatpush.msra.mxu0 0.0
    %521 = vmatpush.msra.mxu0 0.0
    %522 = vmatpush.msra.mxu0 0.0
    %523 = vmatpush.msra.mxu0 0.0
    %524 = vmatpush.msra.mxu0 0.0
    %525 = vmatpush.msra.mxu0 0.0
    %526 = vmatpush.msra.mxu0 0.0
    %527 = vmatpush.msra.mxu0 0.0
    %528 = vmatpush.msra.mxu0 0.0
    %529 = vmatpush.msra.mxu0 %v76
    %530 = vmatpush.msra.mxu0 %v75
    %531 = vmatpush.msra.mxu0 %v74
    %532 = vmatpush.msra.mxu0 %v73
    %533 = vmatmul.f32.gmra.mxu0 %v515
    %v534 = vpop.f32.mrf.mxu0
    %v535 = vadd.f32 0.0, %v534
    %536 = vdwg.mxu0
    %538 = vrot.lane.b32.xlu0 %v511, 32
    %v539 = vpop.permute.xlu0 %538
    %v540 = vsel %vm79, %v539, 0
    %542 = vmatpush.msra.mxu0 0.0
    %543 = vmatpush.msra.mxu0 0.0
    %544 = vmatpush.msra.mxu0 0.0
    %545 = vmatpush.msra.mxu0 0.0
    %546 = vmatpush.msra.mxu0 0.0
    %547 = vmatpush.msra.mxu0 0.0
    %548 = vmatpush.msra.mxu0 0.0
    %549 = vmatpush.msra.mxu0 0.0
    %550 = vmatpush.msra.mxu0 0.0
    %551 = vmatpush.msra.mxu0 0.0
    %552 = vmatpush.msra.mxu0 0.0
    %553 = vmatpush.msra.mxu0 0.0
    %554 = vmatpush.msra.mxu0 %v72
    %555 = vmatpush.msra.mxu0 %v71
    %556 = vmatpush.msra.mxu0 %v70
    %557 = vmatpush.msra.mxu0 %v69
    %558 = vmatmul.f32.gmra.mxu0 %v540
    %v559 = vpop.f32.mrf.mxu0
    %v560 = vadd.f32 %v535, %v559
    %561 = vdwg.mxu0
    %v562 = vadd.f32 %v560, %v218
    %v563 = vxor.u32 %v562, 2147483648
    %v564 = vmul.f32 %v563, 1.442695
    %v565 = vpow.pop %v564
    %v566 = vadd.f32 %v565, 1.0
    %v567 = vrcp.pop %v566
    %v568 = vmul.f32 %v566, %v567
    %v569 = vsub.f32 1.0, %v568
    %v570 = vmul.f32 %v567, %v569
    %v571 = vadd.f32 %v567, %v570
    %vm572 = vweird.f32 %v566
    %vm573 = vweird.f32 %v567
    %vm574 = vmor %vm572, %vm573
    %v575 = vsel %vm574, %v567, %v571
    %v576 = vand.u32 2147483647, %v566
    %vm577 = vcmp.eq.f32.partialorder %v576, 8.507059e+37
    %v578 = vand.u32 %v566, 2147483648
    %v579 = vor.u32 1.1754944e-38, %v578
    %v580 = vsel %vm577, %v579, %v575
    %v581 = vmul.f32 1.0, %v580
    %v582 = vtanh.pop %v562
    %v583 = vmul.f32 %v581, %v422
    %585 = vrot.lane.b32.xlu0 %v582, 64
    %v586 = vpop.permute.xlu0 %585
    %v588 = vmul.f32 %v581, %v586
    %590 = vrot.lane.b32.xlu0 %v588, 32
    %v591 = vpop.permute.xlu0 %590
    %v593 = vadd.f32 %v583, %v591
    %v594 = vtanh.pop %v593
    %596 = vrot.lane.b32.xlu0 %v594, 64
    %v597 = vpop.permute.xlu0 %596
    %v599 = vmul.f32 %v581, %v597
    %s600 = scalar_lea.vmem %s0, 24
    %v601 = vld [vmem:[%s600] sm:$0xff]
    %602 = vmatpush.msra.mxu0 0.0
    %603 = vmatpush.msra.mxu0 0.0
    %604 = vmatpush.msra.mxu0 0.0
    %605 = vmatpush.msra.mxu0 0.0
    %606 = vmatpush.msra.mxu0 0.0
    %607 = vmatpush.msra.mxu0 0.0
    %608 = vmatpush.msra.mxu0 0.0
    %609 = vmatpush.msra.mxu0 0.0
    %610 = vmatpush.msra.mxu0 0.0
    %611 = vmatpush.msra.mxu0 0.0
    %612 = vmatpush.msra.mxu0 0.0
    %613 = vmatpush.msra.mxu0 0.0
    %614 = vmatpush.msra.mxu0 %v67
    %615 = vmatpush.msra.mxu0 %v66
    %616 = vmatpush.msra.mxu0 %v65
    %617 = vmatpush.msra.mxu0 %v64
    %618 = vmatmul.f32.gmra.mxu0 %v540
    %v619 = vpop.f32.mrf.mxu0
    %v620 = vadd.f32 0.0, %v619
    %621 = vdwg.mxu0
    %v623 = vsel %vm103, %v601, 0
    %625 = vmatpush.msra.mxu0 0.0
    %626 = vmatpush.msra.mxu0 0.0
    %627 = vmatpush.msra.mxu0 0.0
    %628 = vmatpush.msra.mxu0 0.0
    %629 = vmatpush.msra.mxu0 0.0
    %630 = vmatpush.msra.mxu0 0.0
    %631 = vmatpush.msra.mxu0 0.0
    %632 = vmatpush.msra.mxu0 0.0
    %633 = vmatpush.msra.mxu0 0.0
    %634 = vmatpush.msra.mxu0 0.0
    %635 = vmatpush.msra.mxu0 0.0
    %636 = vmatpush.msra.mxu0 0.0
    %637 = vmatpush.msra.mxu0 0.0
    %638 = vmatpush.msra.mxu0 0.0
    %639 = vmatpush.msra.mxu0 0.0
    %640 = vmatpush.msra.mxu0 %v109
    %641 = vmatmul.f32.gmra.mxu0 %v623
    %v642 = vpop.f32.mrf.mxu0
    %v643 = vadd.f32 %v620, %v642
    %644 = vdwg.mxu0
    %v645 = vadd.f32 %v643, %v132
    %v646 = vxor.u32 %v645, 2147483648
    %v647 = vmul.f32 %v646, 1.442695
    %v648 = vpow.pop %v647
    %v649 = vadd.f32 %v648, 1.0
    %v650 = vrcp.pop %v649
    %v651 = vmul.f32 %v649, %v650
    %v652 = vsub.f32 1.0, %v651
    %v653 = vmul.f32 %v650, %v652
    %v654 = vadd.f32 %v650, %v653
    %vm655 = vweird.f32 %v649
    %vm656 = vweird.f32 %v650
    %vm657 = vmor %vm655, %vm656
    %v658 = vsel %vm657, %v650, %v654
    %v659 = vand.u32 2147483647, %v649
    %vm660 = vcmp.eq.f32.partialorder %v659, 8.507059e+37
    %v661 = vand.u32 %v649, 2147483648
    %v662 = vor.u32 1.1754944e-38, %v661
    %v663 = vsel %vm660, %v662, %v658
    %v664 = vmul.f32 1.0, %v663
    %v665 = vtanh.pop %v645
    %v666 = vmul.f32 %v664, %v505
    %668 = vrot.lane.b32.xlu0 %v665, 64
    %v669 = vpop.permute.xlu0 %668
    %v671 = vmul.f32 %v664, %v669
    %673 = vrot.lane.b32.xlu0 %v671, 32
    %v674 = vpop.permute.xlu0 %673
    %v676 = vadd.f32 %v666, %v674
    %v677 = vtanh.pop %v676
    %679 = vrot.lane.b32.xlu0 %v677, 64
    %v680 = vpop.permute.xlu0 %679
    %v682 = vmul.f32 %v664, %v680
    %684 = vrot.lane.b32.xlu0 %v599, 32
    %v685 = vpop.permute.xlu0 %684
    %v686 = vsel %vm79, %v685, 0
    %688 = vmatpush.msra.mxu0 0.0
    %689 = vmatpush.msra.mxu0 0.0
    %690 = vmatpush.msra.mxu0 0.0
    %691 = vmatpush.msra.mxu0 0.0
    %692 = vmatpush.msra.mxu0 0.0
    %693 = vmatpush.msra.mxu0 0.0
    %694 = vmatpush.msra.mxu0 0.0
    %695 = vmatpush.msra.mxu0 0.0
    %696 = vmatpush.msra.mxu0 0.0
    %697 = vmatpush.msra.mxu0 0.0
    %698 = vmatpush.msra.mxu0 0.0
    %699 = vmatpush.msra.mxu0 0.0
    %700 = vmatpush.msra.mxu0 %v76
    %701 = vmatpush.msra.mxu0 %v75
    %702 = vmatpush.msra.mxu0 %v74
    %703 = vmatpush.msra.mxu0 %v73
    %704 = vmatmul.f32.gmra.mxu0 %v686
    %v705 = vpop.f32.mrf.mxu0
    %v706 = vadd.f32 0.0, %v705
    %707 = vdwg.mxu0
    %709 = vrot.lane.b32.xlu0 %v682, 32
    %v710 = vpop.permute.xlu0 %709
    %v711 = vsel %vm79, %v710, 0
    %713 = vmatpush.msra.mxu0 0.0
    %714 = vmatpush.msra.mxu0 0.0
    %715 = vmatpush.msra.mxu0 0.0
    %716 = vmatpush.msra.mxu0 0.0
    %717 = vmatpush.msra.mxu0 0.0
    %718 = vmatpush.msra.mxu0 0.0
    %719 = vmatpush.msra.mxu0 0.0
    %720 = vmatpush.msra.mxu0 0.0
    %721 = vmatpush.msra.mxu0 0.0
    %722 = vmatpush.msra.mxu0 0.0
    %723 = vmatpush.msra.mxu0 0.0
    %724 = vmatpush.msra.mxu0 0.0
    %725 = vmatpush.msra.mxu0 %v72
    %726 = vmatpush.msra.mxu0 %v71
    %727 = vmatpush.msra.mxu0 %v70
    %728 = vmatpush.msra.mxu0 %v69
    %729 = vmatmul.f32.gmra.mxu0 %v711
    %v730 = vpop.f32.mrf.mxu0
    %v731 = vadd.f32 %v706, %v730
    %732 = vdwg.mxu0
    %v733 = vadd.f32 %v731, %v218
    %v734 = vxor.u32 %v733, 2147483648
    %v735 = vmul.f32 %v734, 1.442695
    %v736 = vpow.pop %v735
    %v737 = vadd.f32 %v736, 1.0
    %v738 = vrcp.pop %v737
    %v739 = vmul.f32 %v737, %v738
    %v740 = vsub.f32 1.0, %v739
    %v741 = vmul.f32 %v738, %v740
    %v742 = vadd.f32 %v738, %v741
    %vm743 = vweird.f32 %v737
    %vm744 = vweird.f32 %v738
    %vm745 = vmor %vm743, %vm744
    %v746 = vsel %vm745, %v738, %v742
    %v747 = vand.u32 2147483647, %v737
    %vm748 = vcmp.eq.f32.partialorder %v747, 8.507059e+37
    %v749 = vand.u32 %v737, 2147483648
    %v750 = vor.u32 1.1754944e-38, %v749
    %v751 = vsel %vm748, %v750, %v746
    %v752 = vmul.f32 1.0, %v751
    %v753 = vtanh.pop %v733
    %v754 = vmul.f32 %v752, %v593
    %756 = vrot.lane.b32.xlu0 %v753, 64
    %v757 = vpop.permute.xlu0 %756
    %v759 = vmul.f32 %v752, %v757
    %761 = vrot.lane.b32.xlu0 %v759, 32
    %v762 = vpop.permute.xlu0 %761
    %v764 = vadd.f32 %v754, %v762
    %v765 = vtanh.pop %v764
    %767 = vrot.lane.b32.xlu0 %v765, 64
    %v768 = vpop.permute.xlu0 %767
    %v770 = vmul.f32 %v752, %v768
    %s771 = scalar_lea.vmem %s0, 32
    %v772 = vld [vmem:[%s771] sm:$0xff]
    %773 = vmatpush.msra.mxu0 0.0
    %774 = vmatpush.msra.mxu0 0.0
    %775 = vmatpush.msra.mxu0 0.0
    %776 = vmatpush.msra.mxu0 0.0
    %777 = vmatpush.msra.mxu0 0.0
    %778 = vmatpush.msra.mxu0 0.0
    %779 = vmatpush.msra.mxu0 0.0
    %780 = vmatpush.msra.mxu0 0.0
    %781 = vmatpush.msra.mxu0 0.0
    %782 = vmatpush.msra.mxu0 0.0
    %783 = vmatpush.msra.mxu0 0.0
    %784 = vmatpush.msra.mxu0 0.0
    %785 = vmatpush.msra.mxu0 %v67
    %786 = vmatpush.msra.mxu0 %v66
    %787 = vmatpush.msra.mxu0 %v65
    %788 = vmatpush.msra.mxu0 %v64
    %789 = vmatmul.f32.gmra.mxu0 %v711
    %v790 = vpop.f32.mrf.mxu0
    %v791 = vadd.f32 0.0, %v790
    %792 = vdwg.mxu0
    %v794 = vsel %vm103, %v772, 0
    %796 = vmatpush.msra.mxu0 0.0
    %797 = vmatpush.msra.mxu0 0.0
    %798 = vmatpush.msra.mxu0 0.0
    %799 = vmatpush.msra.mxu0 0.0
    %800 = vmatpush.msra.mxu0 0.0
    %801 = vmatpush.msra.mxu0 0.0
    %802 = vmatpush.msra.mxu0 0.0
    %803 = vmatpush.msra.mxu0 0.0
    %804 = vmatpush.msra.mxu0 0.0
    %805 = vmatpush.msra.mxu0 0.0
    %806 = vmatpush.msra.mxu0 0.0
    %807 = vmatpush.msra.mxu0 0.0
    %808 = vmatpush.msra.mxu0 0.0
    %809 = vmatpush.msra.mxu0 0.0
    %810 = vmatpush.msra.mxu0 0.0
    %811 = vmatpush.msra.mxu0 %v109
    %812 = vmatmul.f32.gmra.mxu0 %v794
    %v813 = vpop.f32.mrf.mxu0
    %v814 = vadd.f32 %v791, %v813
    %815 = vdwg.mxu0
    %v816 = vadd.f32 %v814, %v132
    %v817 = vxor.u32 %v816, 2147483648
    %v818 = vmul.f32 %v817, 1.442695
    %v819 = vpow.pop %v818
    %v820 = vadd.f32 %v819, 1.0
    %v821 = vrcp.pop %v820
    %v822 = vmul.f32 %v820, %v821
    %v823 = vsub.f32 1.0, %v822
    %v824 = vmul.f32 %v821, %v823
    %v825 = vadd.f32 %v821, %v824
    %vm826 = vweird.f32 %v820
    %vm827 = vweird.f32 %v821
    %vm828 = vmor %vm826, %vm827
    %v829 = vsel %vm828, %v821, %v825
    %v830 = vand.u32 2147483647, %v820
    %vm831 = vcmp.eq.f32.partialorder %v830, 8.507059e+37
    %v832 = vand.u32 %v820, 2147483648
    %v833 = vor.u32 1.1754944e-38, %v832
    %v834 = vsel %vm831, %v833, %v829
    %v835 = vmul.f32 1.0, %v834
    %v836 = vtanh.pop %v816
    %v837 = vmul.f32 %v835, %v676
    %839 = vrot.lane.b32.xlu0 %v836, 64
    %v840 = vpop.permute.xlu0 %839
    %v842 = vmul.f32 %v835, %v840
    %844 = vrot.lane.b32.xlu0 %v842, 32
    %v845 = vpop.permute.xlu0 %844
    %v847 = vadd.f32 %v837, %v845
    %v848 = vtanh.pop %v847
    %850 = vrot.lane.b32.xlu0 %v848, 64
    %v851 = vpop.permute.xlu0 %850
    %v853 = vmul.f32 %v835, %v851
    %855 = vrot.lane.b32.xlu0 %v770, 32
    %v856 = vpop.permute.xlu0 %855
    %v857 = vsel %vm79, %v856, 0
    %859 = vmatpush.msra.mxu0 0.0
    %860 = vmatpush.msra.mxu0 0.0
    %861 = vmatpush.msra.mxu0 0.0
    %862 = vmatpush.msra.mxu0 0.0
    %863 = vmatpush.msra.mxu0 0.0
    %864 = vmatpush.msra.mxu0 0.0
    %865 = vmatpush.msra.mxu0 0.0
    %866 = vmatpush.msra.mxu0 0.0
    %867 = vmatpush.msra.mxu0 0.0
    %868 = vmatpush.msra.mxu0 0.0
    %869 = vmatpush.msra.mxu0 0.0
    %870 = vmatpush.msra.mxu0 0.0
    %871 = vmatpush.msra.mxu0 %v76
    %872 = vmatpush.msra.mxu0 %v75
    %873 = vmatpush.msra.mxu0 %v74
    %874 = vmatpush.msra.mxu0 %v73
    %875 = vmatmul.f32.gmra.mxu0 %v857
    %v876 = vpop.f32.mrf.mxu0
    %v877 = vadd.f32 0.0, %v876
    %878 = vdwg.mxu0
    %880 = vrot.lane.b32.xlu0 %v853, 32
    %v881 = vpop.permute.xlu0 %880
    %v882 = vsel %vm79, %v881, 0
    %884 = vmatpush.msra.mxu0 0.0
    %885 = vmatpush.msra.mxu0 0.0
    %886 = vmatpush.msra.mxu0 0.0
    %887 = vmatpush.msra.mxu0 0.0
    %888 = vmatpush.msra.mxu0 0.0
    %889 = vmatpush.msra.mxu0 0.0
    %890 = vmatpush.msra.mxu0 0.0
    %891 = vmatpush.msra.mxu0 0.0
    %892 = vmatpush.msra.mxu0 0.0
    %893 = vmatpush.msra.mxu0 0.0
    %894 = vmatpush.msra.mxu0 0.0
    %895 = vmatpush.msra.mxu0 0.0
    %896 = vmatpush.msra.mxu0 %v72
    %897 = vmatpush.msra.mxu0 %v71
    %898 = vmatpush.msra.mxu0 %v70
    %899 = vmatpush.msra.mxu0 %v69
    %900 = vmatmul.f32.gmra.mxu0 %v882
    %v901 = vpop.f32.mrf.mxu0
    %v902 = vadd.f32 %v877, %v901
    %903 = vdwg.mxu0
    %v904 = vadd.f32 %v902, %v218
    %v905 = vxor.u32 %v904, 2147483648
    %v906 = vmul.f32 %v905, 1.442695
    %v907 = vpow.pop %v906
    %v908 = vadd.f32 %v907, 1.0
    %v909 = vrcp.pop %v908
    %v910 = vmul.f32 %v908, %v909
    %v911 = vsub.f32 1.0, %v910
    %v912 = vmul.f32 %v909, %v911
    %v913 = vadd.f32 %v909, %v912
    %vm914 = vweird.f32 %v908
    %vm915 = vweird.f32 %v909
    %vm916 = vmor %vm914, %vm915
    %v917 = vsel %vm916, %v909, %v913
    %v918 = vand.u32 2147483647, %v908
    %vm919 = vcmp.eq.f32.partialorder %v918, 8.507059e+37
    %v920 = vand.u32 %v908, 2147483648
    %v921 = vor.u32 1.1754944e-38, %v920
    %v922 = vsel %vm919, %v921, %v917
    %v923 = vmul.f32 1.0, %v922
    %v924 = vtanh.pop %v904
    %v925 = vmul.f32 %v923, %v764
    %927 = vrot.lane.b32.xlu0 %v924, 64
    %v928 = vpop.permute.xlu0 %927
    %v930 = vmul.f32 %v923, %v928
    %932 = vrot.lane.b32.xlu0 %v930, 32
    %v933 = vpop.permute.xlu0 %932
    %v935 = vadd.f32 %v925, %v933
    %v936 = vtanh.pop %v935
    %938 = vrot.lane.b32.xlu0 %v936, 64
    %v939 = vpop.permute.xlu0 %938
    %v941 = vmul.f32 %v923, %v939
    %s942 = scalar_lea.vmem %s0, 40
    %v943 = vld [vmem:[%s942] sm:$0xff]
    %944 = vmatpush.msra.mxu0 0.0
    %945 = vmatpush.msra.mxu0 0.0
    %946 = vmatpush.msra.mxu0 0.0
    %947 = vmatpush.msra.mxu0 0.0
    %948 = vmatpush.msra.mxu0 0.0
    %949 = vmatpush.msra.mxu0 0.0
    %950 = vmatpush.msra.mxu0 0.0
    %951 = vmatpush.msra.mxu0 0.0
    %952 = vmatpush.msra.mxu0 0.0
    %953 = vmatpush.msra.mxu0 0.0
    %954 = vmatpush.msra.mxu0 0.0
    %955 = vmatpush.msra.mxu0 0.0
    %956 = vmatpush.msra.mxu0 %v67
    %957 = vmatpush.msra.mxu0 %v66
    %958 = vmatpush.msra.mxu0 %v65
    %959 = vmatpush.msra.mxu0 %v64
    %960 = vmatmul.f32.gmra.mxu0 %v882
    %v961 = vpop.f32.mrf.mxu0
    %v962 = vadd.f32 0.0, %v961
    %963 = vdwg.mxu0
    %v965 = vsel %vm103, %v943, 0
    %967 = vmatpush.msra.mxu0 0.0
    %968 = vmatpush.msra.mxu0 0.0
    %969 = vmatpush.msra.mxu0 0.0
    %970 = vmatpush.msra.mxu0 0.0
    %971 = vmatpush.msra.mxu0 0.0
    %972 = vmatpush.msra.mxu0 0.0
    %973 = vmatpush.msra.mxu0 0.0
    %974 = vmatpush.msra.mxu0 0.0
    %975 = vmatpush.msra.mxu0 0.0
    %976 = vmatpush.msra.mxu0 0.0
    %977 = vmatpush.msra.mxu0 0.0
    %978 = vmatpush.msra.mxu0 0.0
    %979 = vmatpush.msra.mxu0 0.0
    %980 = vmatpush.msra.mxu0 0.0
    %981 = vmatpush.msra.mxu0 0.0
    %982 = vmatpush.msra.mxu0 %v109
    %983 = vmatmul.f32.gmra.mxu0 %v965
    %v984 = vpop.f32.mrf.mxu0
    %v985 = vadd.f32 %v962, %v984
    %986 = vdwg.mxu0
    %v987 = vadd.f32 %v985, %v132
    %v988 = vxor.u32 %v987, 2147483648
    %v989 = vmul.f32 %v988, 1.442695
    %v990 = vpow.pop %v989
    %v991 = vadd.f32 %v990, 1.0
    %v992 = vrcp.pop %v991
    %v993 = vmul.f32 %v991, %v992
    %v994 = vsub.f32 1.0, %v993
    %v995 = vmul.f32 %v992, %v994
    %v996 = vadd.f32 %v992, %v995
    %vm997 = vweird.f32 %v991
    %vm998 = vweird.f32 %v992
    %vm999 = vmor %vm997, %vm998
    %v1000 = vsel %vm999, %v992, %v996
    %v1001 = vand.u32 2147483647, %v991
    %vm1002 = vcmp.eq.f32.partialorder %v1001, 8.507059e+37
    %v1003 = vand.u32 %v991, 2147483648
    %v1004 = vor.u32 1.1754944e-38, %v1003
    %v1005 = vsel %vm1002, %v1004, %v1000
    %v1006 = vmul.f32 1.0, %v1005
    %v1007 = vtanh.pop %v987
    %v1008 = vmul.f32 %v1006, %v847
    %1010 = vrot.lane.b32.xlu0 %v1007, 64
    %v1011 = vpop.permute.xlu0 %1010
    %v1013 = vmul.f32 %v1006, %v1011
    %1015 = vrot.lane.b32.xlu0 %v1013, 32
    %v1016 = vpop.permute.xlu0 %1015
    %v1018 = vadd.f32 %v1008, %v1016
    %v1019 = vtanh.pop %v1018
    %1021 = vrot.lane.b32.xlu0 %v1019, 64
    %v1022 = vpop.permute.xlu0 %1021
    %v1024 = vmul.f32 %v1006, %v1022
    %1026 = vrot.lane.b32.xlu0 %v941, 32
    %v1027 = vpop.permute.xlu0 %1026
    %v1028 = vsel %vm79, %v1027, 0
    %1030 = vmatpush.msra.mxu0 0.0
    %1031 = vmatpush.msra.mxu0 0.0
    %1032 = vmatpush.msra.mxu0 0.0
    %1033 = vmatpush.msra.mxu0 0.0
    %1034 = vmatpush.msra.mxu0 0.0
    %1035 = vmatpush.msra.mxu0 0.0
    %1036 = vmatpush.msra.mxu0 0.0
    %1037 = vmatpush.msra.mxu0 0.0
    %1038 = vmatpush.msra.mxu0 0.0
    %1039 = vmatpush.msra.mxu0 0.0
    %1040 = vmatpush.msra.mxu0 0.0
    %1041 = vmatpush.msra.mxu0 0.0
    %1042 = vmatpush.msra.mxu0 %v76
    %1043 = vmatpush.msra.mxu0 %v75
    %1044 = vmatpush.msra.mxu0 %v74
    %1045 = vmatpush.msra.mxu0 %v73
    %1046 = vmatmul.f32.gmra.mxu0 %v1028
    %v1047 = vpop.f32.mrf.mxu0
    %v1048 = vadd.f32 0.0, %v1047
    %1049 = vdwg.mxu0
    %1051 = vrot.lane.b32.xlu0 %v1024, 32
    %v1052 = vpop.permute.xlu0 %1051
    %v1053 = vsel %vm79, %v1052, 0
    %1055 = vmatpush.msra.mxu0 0.0
    %1056 = vmatpush.msra.mxu0 0.0
    %1057 = vmatpush.msra.mxu0 0.0
    %1058 = vmatpush.msra.mxu0 0.0
    %1059 = vmatpush.msra.mxu0 0.0
    %1060 = vmatpush.msra.mxu0 0.0
    %1061 = vmatpush.msra.mxu0 0.0
    %1062 = vmatpush.msra.mxu0 0.0
    %1063 = vmatpush.msra.mxu0 0.0
    %1064 = vmatpush.msra.mxu0 0.0
    %1065 = vmatpush.msra.mxu0 0.0
    %1066 = vmatpush.msra.mxu0 0.0
    %1067 = vmatpush.msra.mxu0 %v72
    %1068 = vmatpush.msra.mxu0 %v71
    %1069 = vmatpush.msra.mxu0 %v70
    %1070 = vmatpush.msra.mxu0 %v69
    %1071 = vmatmul.f32.gmra.mxu0 %v1053
    %v1072 = vpop.f32.mrf.mxu0
    %v1073 = vadd.f32 %v1048, %v1072
    %1074 = vdwg.mxu0
    %v1075 = vadd.f32 %v1073, %v218
    %v1076 = vxor.u32 %v1075, 2147483648
    %v1077 = vmul.f32 %v1076, 1.442695
    %v1078 = vpow.pop %v1077
    %v1079 = vadd.f32 %v1078, 1.0
    %v1080 = vrcp.pop %v1079
    %v1081 = vmul.f32 %v1079, %v1080
    %v1082 = vsub.f32 1.0, %v1081
    %v1083 = vmul.f32 %v1080, %v1082
    %v1084 = vadd.f32 %v1080, %v1083
    %vm1085 = vweird.f32 %v1079
    %vm1086 = vweird.f32 %v1080
    %vm1087 = vmor %vm1085, %vm1086
    %v1088 = vsel %vm1087, %v1080, %v1084
    %v1089 = vand.u32 2147483647, %v1079
    %vm1090 = vcmp.eq.f32.partialorder %v1089, 8.507059e+37
    %v1091 = vand.u32 %v1079, 2147483648
    %v1092 = vor.u32 1.1754944e-38, %v1091
    %v1093 = vsel %vm1090, %v1092, %v1088
    %v1094 = vmul.f32 1.0, %v1093
    %v1095 = vtanh.pop %v1075
    %v1096 = vmul.f32 %v1094, %v935
    %1098 = vrot.lane.b32.xlu0 %v1095, 64
    %v1099 = vpop.permute.xlu0 %1098
    %v1101 = vmul.f32 %v1094, %v1099
    %1103 = vrot.lane.b32.xlu0 %v1101, 32
    %v1104 = vpop.permute.xlu0 %1103
    %v1106 = vadd.f32 %v1096, %v1104
    %v1107 = vtanh.pop %v1106
    %1109 = vrot.lane.b32.xlu0 %v1107, 64
    %v1110 = vpop.permute.xlu0 %1109
    %v1112 = vmul.f32 %v1094, %v1110
    %s1113 = scalar_lea.vmem %s0, 48
    %v1114 = vld [vmem:[%s1113] sm:$0xff]
    %1115 = vmatpush.msra.mxu0 0.0
    %1116 = vmatpush.msra.mxu0 0.0
    %1117 = vmatpush.msra.mxu0 0.0
    %1118 = vmatpush.msra.mxu0 0.0
    %1119 = vmatpush.msra.mxu0 0.0
    %1120 = vmatpush.msra.mxu0 0.0
    %1121 = vmatpush.msra.mxu0 0.0
    %1122 = vmatpush.msra.mxu0 0.0
    %1123 = vmatpush.msra.mxu0 0.0
    %1124 = vmatpush.msra.mxu0 0.0
    %1125 = vmatpush.msra.mxu0 0.0
    %1126 = vmatpush.msra.mxu0 0.0
    %1127 = vmatpush.msra.mxu0 %v67
    %1128 = vmatpush.msra.mxu0 %v66
    %1129 = vmatpush.msra.mxu0 %v65
    %1130 = vmatpush.msra.mxu0 %v64
    %1131 = vmatmul.f32.gmra.mxu0 %v1053
    %v1132 = vpop.f32.mrf.mxu0
    %v1133 = vadd.f32 0.0, %v1132
    %1134 = vdwg.mxu0
    %v1136 = vsel %vm103, %v1114, 0
    %1138 = vmatpush.msra.mxu0 0.0
    %1139 = vmatpush.msra.mxu0 0.0
    %1140 = vmatpush.msra.mxu0 0.0
    %1141 = vmatpush.msra.mxu0 0.0
    %1142 = vmatpush.msra.mxu0 0.0
    %1143 = vmatpush.msra.mxu0 0.0
    %1144 = vmatpush.msra.mxu0 0.0
    %1145 = vmatpush.msra.mxu0 0.0
    %1146 = vmatpush.msra.mxu0 0.0
    %1147 = vmatpush.msra.mxu0 0.0
    %1148 = vmatpush.msra.mxu0 0.0
    %1149 = vmatpush.msra.mxu0 0.0
    %1150 = vmatpush.msra.mxu0 0.0
    %1151 = vmatpush.msra.mxu0 0.0
    %1152 = vmatpush.msra.mxu0 0.0
    %1153 = vmatpush.msra.mxu0 %v109
    %1154 = vmatmul.f32.gmra.mxu0 %v1136
    %v1155 = vpop.f32.mrf.mxu0
    %v1156 = vadd.f32 %v1133, %v1155
    %1157 = vdwg.mxu0
    %v1158 = vadd.f32 %v1156, %v132
    %v1159 = vxor.u32 %v1158, 2147483648
    %v1160 = vmul.f32 %v1159, 1.442695
    %v1161 = vpow.pop %v1160
    %v1162 = vadd.f32 %v1161, 1.0
    %v1163 = vrcp.pop %v1162
    %v1164 = vmul.f32 %v1162, %v1163
    %v1165 = vsub.f32 1.0, %v1164
    %v1166 = vmul.f32 %v1163, %v1165
    %v1167 = vadd.f32 %v1163, %v1166
    %vm1168 = vweird.f32 %v1162
    %vm1169 = vweird.f32 %v1163
    %vm1170 = vmor %vm1168, %vm1169
    %v1171 = vsel %vm1170, %v1163, %v1167
    %v1172 = vand.u32 2147483647, %v1162
    %vm1173 = vcmp.eq.f32.partialorder %v1172, 8.507059e+37
    %v1174 = vand.u32 %v1162, 2147483648
    %v1175 = vor.u32 1.1754944e-38, %v1174
    %v1176 = vsel %vm1173, %v1175, %v1171
    %v1177 = vmul.f32 1.0, %v1176
    %v1178 = vtanh.pop %v1158
    %v1179 = vmul.f32 %v1177, %v1018
    %1181 = vrot.lane.b32.xlu0 %v1178, 64
    %v1182 = vpop.permute.xlu0 %1181
    %v1184 = vmul.f32 %v1177, %v1182
    %1186 = vrot.lane.b32.xlu0 %v1184, 32
    %v1187 = vpop.permute.xlu0 %1186
    %v1189 = vadd.f32 %v1179, %v1187
    %v1190 = vtanh.pop %v1189
    %1192 = vrot.lane.b32.xlu0 %v1190, 64
    %v1193 = vpop.permute.xlu0 %1192
    %v1195 = vmul.f32 %v1177, %v1193
    %1197 = vrot.lane.b32.xlu0 %v1112, 32
    %v1198 = vpop.permute.xlu0 %1197
    %v1199 = vsel %vm79, %v1198, 0
    %1201 = vmatpush.msra.mxu0 0.0
    %1202 = vmatpush.msra.mxu0 0.0
    %1203 = vmatpush.msra.mxu0 0.0
    %1204 = vmatpush.msra.mxu0 0.0
    %1205 = vmatpush.msra.mxu0 0.0
    %1206 = vmatpush.msra.mxu0 0.0
    %1207 = vmatpush.msra.mxu0 0.0
    %1208 = vmatpush.msra.mxu0 0.0
    %1209 = vmatpush.msra.mxu0 0.0
    %1210 = vmatpush.msra.mxu0 0.0
    %1211 = vmatpush.msra.mxu0 0.0
    %1212 = vmatpush.msra.mxu0 0.0
    %1213 = vmatpush.msra.mxu0 %v76
    %1214 = vmatpush.msra.mxu0 %v75
    %1215 = vmatpush.msra.mxu0 %v74
    %1216 = vmatpush.msra.mxu0 %v73
    %1217 = vmatmul.f32.gmra.mxu0 %v1199
    %v1218 = vpop.f32.mrf.mxu0
    %v1219 = vadd.f32 0.0, %v1218
    %1220 = vdwg.mxu0
    %1222 = vrot.lane.b32.xlu0 %v1195, 32
    %v1223 = vpop.permute.xlu0 %1222
    %v1224 = vsel %vm79, %v1223, 0
    %1226 = vmatpush.msra.mxu0 0.0
    %1227 = vmatpush.msra.mxu0 0.0
    %1228 = vmatpush.msra.mxu0 0.0
    %1229 = vmatpush.msra.mxu0 0.0
    %1230 = vmatpush.msra.mxu0 0.0
    %1231 = vmatpush.msra.mxu0 0.0
    %1232 = vmatpush.msra.mxu0 0.0
    %1233 = vmatpush.msra.mxu0 0.0
    %1234 = vmatpush.msra.mxu0 0.0
    %1235 = vmatpush.msra.mxu0 0.0
    %1236 = vmatpush.msra.mxu0 0.0
    %1237 = vmatpush.msra.mxu0 0.0
    %1238 = vmatpush.msra.mxu0 %v72
    %1239 = vmatpush.msra.mxu0 %v71
    %1240 = vmatpush.msra.mxu0 %v70
    %1241 = vmatpush.msra.mxu0 %v69
    %1242 = vmatmul.f32.gmra.mxu0 %v1224
    %v1243 = vpop.f32.mrf.mxu0
    %v1244 = vadd.f32 %v1219, %v1243
    %1245 = vdwg.mxu0
    %v1246 = vadd.f32 %v1244, %v218
    %v1247 = vxor.u32 %v1246, 2147483648
    %v1248 = vmul.f32 %v1247, 1.442695
    %v1249 = vpow.pop %v1248
    %v1250 = vadd.f32 %v1249, 1.0
    %v1251 = vrcp.pop %v1250
    %v1252 = vmul.f32 %v1250, %v1251
    %v1253 = vsub.f32 1.0, %v1252
    %v1254 = vmul.f32 %v1251, %v1253
    %v1255 = vadd.f32 %v1251, %v1254
    %vm1256 = vweird.f32 %v1250
    %vm1257 = vweird.f32 %v1251
    %vm1258 = vmor %vm1256, %vm1257
    %v1259 = vsel %vm1258, %v1251, %v1255
    %v1260 = vand.u32 2147483647, %v1250
    %vm1261 = vcmp.eq.f32.partialorder %v1260, 8.507059e+37
    %v1262 = vand.u32 %v1250, 2147483648
    %v1263 = vor.u32 1.1754944e-38, %v1262
    %v1264 = vsel %vm1261, %v1263, %v1259
    %v1265 = vmul.f32 1.0, %v1264
    %v1266 = vtanh.pop %v1246
    %v1267 = vmul.f32 %v1265, %v1106
    %1269 = vrot.lane.b32.xlu0 %v1266, 64
    %v1270 = vpop.permute.xlu0 %1269
    %v1272 = vmul.f32 %v1265, %v1270
    %1274 = vrot.lane.b32.xlu0 %v1272, 32
    %v1275 = vpop.permute.xlu0 %1274
    %v1277 = vadd.f32 %v1267, %v1275
    %v1278 = vtanh.pop %v1277
    %1280 = vrot.lane.b32.xlu0 %v1278, 64
    %v1281 = vpop.permute.xlu0 %1280
    %v1283 = vmul.f32 %v1265, %v1281
    %s1284 = scalar_lea.vmem %s0, 56
    %v1285 = vld [vmem:[%s1284] sm:$0xff]
    %1286 = vmatpush.msra.mxu0 0.0
    %1287 = vmatpush.msra.mxu0 0.0
    %1288 = vmatpush.msra.mxu0 0.0
    %1289 = vmatpush.msra.mxu0 0.0
    %1290 = vmatpush.msra.mxu0 0.0
    %1291 = vmatpush.msra.mxu0 0.0
    %1292 = vmatpush.msra.mxu0 0.0
    %1293 = vmatpush.msra.mxu0 0.0
    %1294 = vmatpush.msra.mxu0 0.0
    %1295 = vmatpush.msra.mxu0 0.0
    %1296 = vmatpush.msra.mxu0 0.0
    %1297 = vmatpush.msra.mxu0 0.0
    %1298 = vmatpush.msra.mxu0 %v67
    %1299 = vmatpush.msra.mxu0 %v66
    %1300 = vmatpush.msra.mxu0 %v65
    %1301 = vmatpush.msra.mxu0 %v64
    %1302 = vmatmul.f32.gmra.mxu0 %v1224
    %v1303 = vpop.f32.mrf.mxu0
    %v1304 = vadd.f32 0.0, %v1303
    %1305 = vdwg.mxu0
    %v1307 = vsel %vm103, %v1285, 0
    %1309 = vmatpush.msra.mxu0 0.0
    %1310 = vmatpush.msra.mxu0 0.0
    %1311 = vmatpush.msra.mxu0 0.0
    %1312 = vmatpush.msra.mxu0 0.0
    %1313 = vmatpush.msra.mxu0 0.0
    %1314 = vmatpush.msra.mxu0 0.0
    %1315 = vmatpush.msra.mxu0 0.0
    %1316 = vmatpush.msra.mxu0 0.0
    %1317 = vmatpush.msra.mxu0 0.0
    %1318 = vmatpush.msra.mxu0 0.0
    %1319 = vmatpush.msra.mxu0 0.0
    %1320 = vmatpush.msra.mxu0 0.0
    %1321 = vmatpush.msra.mxu0 0.0
    %1322 = vmatpush.msra.mxu0 0.0
    %1323 = vmatpush.msra.mxu0 0.0
    %1324 = vmatpush.msra.mxu0 %v109
    %1325 = vmatmul.f32.gmra.mxu0 %v1307
    %v1326 = vpop.f32.mrf.mxu0
    %v1327 = vadd.f32 %v1304, %v1326
    %1328 = vdwg.mxu0
    %v1329 = vadd.f32 %v1327, %v132
    %v1330 = vxor.u32 %v1329, 2147483648
    %v1331 = vmul.f32 %v1330, 1.442695
    %v1332 = vpow.pop %v1331
    %v1333 = vadd.f32 %v1332, 1.0
    %v1334 = vrcp.pop %v1333
    %v1335 = vmul.f32 %v1333, %v1334
    %v1336 = vsub.f32 1.0, %v1335
    %v1337 = vmul.f32 %v1334, %v1336
    %v1338 = vadd.f32 %v1334, %v1337
    %vm1339 = vweird.f32 %v1333
    %vm1340 = vweird.f32 %v1334
    %vm1341 = vmor %vm1339, %vm1340
    %v1342 = vsel %vm1341, %v1334, %v1338
    %v1343 = vand.u32 2147483647, %v1333
    %vm1344 = vcmp.eq.f32.partialorder %v1343, 8.507059e+37
    %v1345 = vand.u32 %v1333, 2147483648
    %v1346 = vor.u32 1.1754944e-38, %v1345
    %v1347 = vsel %vm1344, %v1346, %v1342
    %v1348 = vmul.f32 1.0, %v1347
    %v1349 = vtanh.pop %v1329
    %v1350 = vmul.f32 %v1348, %v1189
    %1352 = vrot.lane.b32.xlu0 %v1349, 64
    %v1353 = vpop.permute.xlu0 %1352
    %v1355 = vmul.f32 %v1348, %v1353
    %1357 = vrot.lane.b32.xlu0 %v1355, 32
    %v1358 = vpop.permute.xlu0 %1357
    %v1360 = vadd.f32 %v1350, %v1358
    %v1361 = vtanh.pop %v1360
    %1363 = vrot.lane.b32.xlu0 %v1361, 64
    %v1364 = vpop.permute.xlu0 %1363
    %v1366 = vmul.f32 %v1348, %v1364
    %1368 = vrot.lane.b32.xlu0 %v1283, 32
    %v1369 = vpop.permute.xlu0 %1368
    %v1370 = vsel %vm79, %v1369, 0
    %1372 = vmatpush.msra.mxu0 0.0
    %1373 = vmatpush.msra.mxu0 0.0
    %1374 = vmatpush.msra.mxu0 0.0
    %1375 = vmatpush.msra.mxu0 0.0
    %1376 = vmatpush.msra.mxu0 0.0
    %1377 = vmatpush.msra.mxu0 0.0
    %1378 = vmatpush.msra.mxu0 0.0
    %1379 = vmatpush.msra.mxu0 0.0
    %1380 = vmatpush.msra.mxu0 0.0
    %1381 = vmatpush.msra.mxu0 0.0
    %1382 = vmatpush.msra.mxu0 0.0
    %1383 = vmatpush.msra.mxu0 0.0
    %1384 = vmatpush.msra.mxu0 %v76
    %1385 = vmatpush.msra.mxu0 %v75
    %1386 = vmatpush.msra.mxu0 %v74
    %1387 = vmatpush.msra.mxu0 %v73
    %1388 = vmatmul.f32.gmra.mxu0 %v1370
    %v1389 = vpop.f32.mrf.mxu0
    %v1390 = vadd.f32 0.0, %v1389
    %1391 = vdwg.mxu0
    %1393 = vrot.lane.b32.xlu0 %v1366, 32
    %v1394 = vpop.permute.xlu0 %1393
    %v1395 = vsel %vm79, %v1394, 0
    %1397 = vmatpush.msra.mxu0 0.0
    %1398 = vmatpush.msra.mxu0 0.0
    %1399 = vmatpush.msra.mxu0 0.0
    %1400 = vmatpush.msra.mxu0 0.0
    %1401 = vmatpush.msra.mxu0 0.0
    %1402 = vmatpush.msra.mxu0 0.0
    %1403 = vmatpush.msra.mxu0 0.0
    %1404 = vmatpush.msra.mxu0 0.0
    %1405 = vmatpush.msra.mxu0 0.0
    %1406 = vmatpush.msra.mxu0 0.0
    %1407 = vmatpush.msra.mxu0 0.0
    %1408 = vmatpush.msra.mxu0 0.0
    %1409 = vmatpush.msra.mxu0 %v72
    %1410 = vmatpush.msra.mxu0 %v71
    %1411 = vmatpush.msra.mxu0 %v70
    %1412 = vmatpush.msra.mxu0 %v69
    %1413 = vmatmul.f32.gmra.mxu0 %v1395
    %v1414 = vpop.f32.mrf.mxu0
    %v1415 = vadd.f32 %v1390, %v1414
    %1416 = vdwg.mxu0
    %v1417 = vadd.f32 %v1415, %v218
    %v1418 = vxor.u32 %v1417, 2147483648
    %v1419 = vmul.f32 %v1418, 1.442695
    %v1420 = vpow.pop %v1419
    %v1421 = vadd.f32 %v1420, 1.0
    %v1422 = vrcp.pop %v1421
    %v1423 = vmul.f32 %v1421, %v1422
    %v1424 = vsub.f32 1.0, %v1423
    %v1425 = vmul.f32 %v1422, %v1424
    %v1426 = vadd.f32 %v1422, %v1425
    %vm1427 = vweird.f32 %v1421
    %vm1428 = vweird.f32 %v1422
    %vm1429 = vmor %vm1427, %vm1428
    %v1430 = vsel %vm1429, %v1422, %v1426
    %v1431 = vand.u32 2147483647, %v1421
    %vm1432 = vcmp.eq.f32.partialorder %v1431, 8.507059e+37
    %v1433 = vand.u32 %v1421, 2147483648
    %v1434 = vor.u32 1.1754944e-38, %v1433
    %v1435 = vsel %vm1432, %v1434, %v1430
    %v1436 = vmul.f32 1.0, %v1435
    %v1437 = vtanh.pop %v1417
    %v1438 = vmul.f32 %v1436, %v1277
    %1440 = vrot.lane.b32.xlu0 %v1437, 64
    %v1441 = vpop.permute.xlu0 %1440
    %v1443 = vmul.f32 %v1436, %v1441
    %1445 = vrot.lane.b32.xlu0 %v1443, 32
    %v1446 = vpop.permute.xlu0 %1445
    %v1448 = vadd.f32 %v1438, %v1446
    %v1449 = vtanh.pop %v1448
    %1451 = vrot.lane.b32.xlu0 %v1449, 64
    %v1452 = vpop.permute.xlu0 %1451
    %v1454 = vmul.f32 %v1436, %v1452
    %v1455 = vld [vmem:[#allocation5] sm:$0xff]
    %v1456 = vld [vmem:[#allocation5 + $0x8] sm:$0xff]
    %v1457 = vld [vmem:[#allocation5 + $0x10] sm:$0xff]
    %v1458 = vld [vmem:[#allocation5 + $0x18] sm:$0xff]
    %v1459 = vld [vmem:[%s8] sm:$0x1]
    %v1461 = vperm.slane %v1459, 0
    %1464 = vrot.lane.b32.xlu0 %v1454, 32
    %v1465 = vpop.permute.xlu0 %1464
    %v1466 = vsel %vm79, %v1465, 0
    %1468 = vmatpush.msra.mxu0 0.0
    %1469 = vmatpush.msra.mxu0 0.0
    %1470 = vmatpush.msra.mxu0 0.0
    %1471 = vmatpush.msra.mxu0 0.0
    %1472 = vmatpush.msra.mxu0 0.0
    %1473 = vmatpush.msra.mxu0 0.0
    %1474 = vmatpush.msra.mxu0 0.0
    %1475 = vmatpush.msra.mxu0 0.0
    %1476 = vmatpush.msra.mxu0 0.0
    %1477 = vmatpush.msra.mxu0 0.0
    %1478 = vmatpush.msra.mxu0 0.0
    %1479 = vmatpush.msra.mxu0 0.0
    %1480 = vmatpush.msra.mxu0 %v1458
    %1481 = vmatpush.msra.mxu0 %v1457
    %1482 = vmatpush.msra.mxu0 %v1456
    %1483 = vmatpush.msra.mxu0 %v1455
    %1484 = vmatmul.f32.gmra.mxu0 %v1466
    %v1485 = vpop.f32.mrf.mxu0
    %v1486 = vadd.f32 %v1461, %v1485
    %1487 = vdwg.mxu0
    %1488 = vst [vmem:[#allocation7] sm:$0xff] %v1486
    // Predicated region
    $region46: #{tpu_custom_call.1} parent=1 // pred_check
      _
    $region47: #{tpu_custom_call.1} parent=1 // pred_check_branch
      %1490 = sbr.rel (0) target = $region49
    $region48: #{tpu_custom_call.1} parent=1 // pred_region
      %1492 = vsyncadd [#allocation4], 0
      %s1494 = sshll.u32 [#allocation7], 4
      %s1495 = int_to_ptr.vmem [resolvable:$true] %s1494
      %s1496 = sshll.u32 %s9, 4
      %s1497 = int_to_ptr.hbm [resolvable:$true] %s1496
      %1499 = dma.vmem_to_hbm [thread:$0]  %s1495, 128, %s1497, [#allocation4]
    $region49: #{tpu_custom_call.1} parent=1 // pred_fallthru
      _
    // Predicated region
    $region50: #{tpu_custom_call.1} parent=1 // pred_check
      _
    $region51: #{tpu_custom_call.1} parent=1 // pred_check_branch
      %1501 = sbr.rel (0) target = $region53
    $region52: #{tpu_custom_call.1} parent=1 // pred_region
      %1503 = dma.done [#allocation4], 128
    $region53: #{tpu_custom_call.1} parent=1 // pred_fallthru
      _
    %1504 = vsyncpa [#allocation3], 1
    %1505 = vsyncpa [#allocation6], 1
    %1506 = vsyncpa [#allocation4], 1

</llo_original>
